<compile_context>
chip_gen: v7x
topology: tpu7x:2x2x1
jax: 0.10.0
libtpu: 0.0.40
codegen_flags: <defaults>
</compile_context>

<pallas_src>
import jax
import jax.numpy as jnp
from jax.experimental import pallas as pl
from jax.experimental.pallas import tpu as pltpu

EPS = 1e-6  # UER LayerNorm eps; unbiased std with eps OUTSIDE the sqrt (not HF BERT LN).


def bert_embedding_kernel(ids_ref, pos_ref, tab_ref, gamma_ref, beta_ref, out_ref):
    """One block of tok_block tokens.

    ids_ref   : (tok_block, 3) int32  — [word_row, seg_row, typ_row] into the fused table
    pos_ref   : (tok_block, E)        — position embedding rows for this block
    tab_ref   : (rows, E)             — fused [word; segment; token_type] table (resident)
    gamma_ref : (1, E) f32, beta_ref : (1, E) f32
    out_ref   : (tok_block, E)
    """
    ids = ids_ref[...]                                    # (T, 3) int32, pre-offset
    t = ids.shape[0]
    rows = tab_ref.shape[0]

    # Multi-hot: exactly one 1 per token in each of the word / segment / token_type row
    # ranges (ranges are disjoint by construction), so one matmul gathers AND sums all
    # three embeddings at once.
    iota = jax.lax.broadcasted_iota(jnp.int32, (t, rows), 1)
    hot = ((iota == ids[:, 0:1]) | (iota == ids[:, 1:2]) | (iota == ids[:, 2:3]))
    hot = hot.astype(jnp.float32)

    tab = tab_ref[...]
    if tab.dtype == jnp.float32:
        # f32 tables: keep the row selection exact (DEFAULT would bf16-truncate).
        x = jnp.dot(hot, tab, preferred_element_type=jnp.float32,
                    precision=jax.lax.Precision.HIGHEST)
    else:
        # bf16 tables: 0/1 selection with f32 accumulation is exact, single MXU pass.
        x = jnp.dot(hot.astype(tab.dtype), tab, preferred_element_type=jnp.float32)

    # Position embedding rows arrive pre-selected via BlockSpec — just add.
    x = x + pos_ref[...].astype(jnp.float32)

    # UER LayerNorm: gamma * (x - mean) / (unbiased_std + eps) + beta   (exact f32 math)
    e = x.shape[-1]
    mean = jnp.mean(x, axis=-1, keepdims=True)
    d = x - mean
    var = jnp.sum(d * d, axis=-1, keepdims=True) / (e - 1)   # torch .std() is unbiased
    y = gamma_ref[...] * (d / (jnp.sqrt(var) + EPS)) + beta_ref[...]

    # Dropout is identity at inference time.
    out_ref[...] = y.astype(out_ref.dtype)


def bert_embedding(src, seg, typ, pos, params, *, tok_block=256,
                   out_dtype=jnp.float32, table_dtype=jnp.bfloat16):
    """params: dict with 'word','position','segment','token_type','gamma','beta'."""
    B, S = src.shape
    wtab = params["word"]
    ptab = params["position"]
    stab = params["segment"]
    ttab = params["token_type"]
    V, E = wtab.shape
    n_seg = stab.shape[0]
    n_typ = ttab.shape[0]
    max_len = ptab.shape[0]

    gamma = params["gamma"].reshape(1, E).astype(jnp.float32)
    beta = params["beta"].reshape(1, E).astype(jnp.float32)

    assert tok_block % 8 == 0, "tok_block must be a multiple of 8 (sublane tiling)"

    # Pad every sequence to a multiple of tok_block so a token block never crosses a
    # sequence boundary -> position rows can be streamed by a plain BlockSpec.
    S_pad = ((S + tok_block - 1) // tok_block) * tok_block
    blocks_per_seq = S_pad // tok_block
    n_pad = B * S_pad
    grid = (n_pad // tok_block,)

    # Fused small table: [word(V); segment(3); token_type(21)], rows padded to x128.
    fused = jnp.concatenate([wtab, stab, ttab], axis=0).astype(table_dtype)
    rows = fused.shape[0]
    rows_pad = ((rows + 127) // 128) * 128
    if rows_pad != rows:
        fused = jnp.pad(fused, ((0, rows_pad - rows), (0, 0)))

    def pad_seq(a):
        a = a.astype(jnp.int32)
        return jnp.pad(a, ((0, 0), (0, S_pad - S)))        # pad tokens -> id 0 (sliced off)

    # Clamp ids (nn.Embedding would error on OOB; here an OOB id would just select
    # nothing from the multi-hot, so clamp to keep semantics sane), then offset into
    # the fused table.
    src_i = pad_seq(jnp.clip(src, 0, V - 1))
    seg_i = pad_seq(jnp.clip(seg, 0, n_seg - 1)) + V
    typ_i = pad_seq(jnp.clip(typ, 0, n_typ - 1)) + (V + n_seg)
    ids3 = jnp.stack([src_i, seg_i, typ_i], axis=-1).reshape(n_pad, 3)

    # Position rows input.
    if pos is None:
        assert S_pad <= max_len, "sequence (padded) exceeds max_length=512"
        pos_rows = ptab.astype(table_dtype)                 # (max_len, E): table streamed directly
        pos_spec = pl.BlockSpec((tok_block, E), lambda i: (i % blocks_per_seq, 0))
    else:
        # TODO(synk): explicit-pos path gathers in the wrapper (XLA gather); could be
        # fused in-kernel with a scalar-prefetched DMA row gather if it matters.
        pos_i = pad_seq(jnp.clip(pos, 0, max_len - 1)).reshape(n_pad)
        pos_rows = ptab.astype(table_dtype)[pos_i]          # (n_pad, E)
        pos_spec = pl.BlockSpec((tok_block, E), lambda i: (i, 0))

    out_flat = pl.pallas_call(
        bert_embedding_kernel,
        out_shape=jax.ShapeDtypeStruct((n_pad, E), out_dtype),
        grid_spec=pltpu.PrefetchScalarGridSpec(
            num_scalar_prefetch=0,
            grid=grid,
            in_specs=[
                pl.BlockSpec((tok_block, 3), lambda i: (i, 0)),   # fused ids
                pos_spec,                                         # position rows
                pl.BlockSpec(fused.shape, lambda i: (0, 0)),      # fused table (VMEM resident)
                pl.BlockSpec((1, E), lambda i: (0, 0)),           # gamma
                pl.BlockSpec((1, E), lambda i: (0, 0)),           # beta
            ],
            out_specs=pl.BlockSpec((tok_block, E), lambda i: (i, 0)),
        ),
        # Token blocks are independent -> both TensorCores on v7x.  At production sizes
        # (E=768, tok_block>=256) also set vmem_limit_bytes explicitly (v5e/v7x budgets).
        compiler_params=pltpu.CompilerParams(dimension_semantics=("parallel",)),
    )(ids3, pos_rows, fused, gamma, beta)

    return out_flat.reshape(B, S_pad, E)[:, :S, :]


def reference_forward(src, seg, typ, pos, params):
    """Pure-JAX reference matching the PyTorch forward (eval mode).

    Gathers from the same (possibly bf16) tables as the kernel and accumulates in f32,
    mirroring the kernel's exact row-select + f32 accumulation.
    """
    x = (params["word"][src].astype(jnp.float32)
         + params["position"][pos].astype(jnp.float32)
         + params["segment"][seg].astype(jnp.float32)
         + params["token_type"][typ].astype(jnp.float32))
    e = x.shape[-1]
    mean = x.mean(-1, keepdims=True)
    d = x - mean
    std = jnp.sqrt((d * d).sum(-1, keepdims=True) / (e - 1))
    g = params["gamma"].astype(jnp.float32)
    b = params["beta"].astype(jnp.float32)
    return g * d / (std + EPS) + b


if __name__ == "__main__":
    # Small, shape-consistent config (emb_size=128 keeps the output lane-dense).
    vocab_size = 30
    emb_size = 128       # args.emb_size
    max_length = 512     # module hard-codes 512
    n_segments = 3
    n_types = 21
    B, S = 2, 200        # each sequence padded to 256 -> grid of 2 blocks of 256 tokens

    key = jax.random.PRNGKey(0)
    k_w, k_p, k_s, k_src = jax.random.split(key, 4)

    # Tables stored in bf16 (the kernel's production dtype); gamma/beta stay f32.
    # Both kernel and reference read the same bf16 values, so the check stays tight.
    params = {
        "word": (0.02 * jax.random.normal(k_w, (vocab_size, emb_size), jnp.float32)
                 ).astype(jnp.bfloat16),
        "position": (0.02 * jax.random.normal(k_p, (max_length, emb_size), jnp.float32)
                     ).astype(jnp.bfloat16),
        "segment": (0.02 * jax.random.normal(k_s, (n_segments, emb_size), jnp.float32)
                    ).astype(jnp.bfloat16),
        # token_type_embeddings initialized with _weight=torch.zeros((21, emb_size))
        "token_type": jnp.zeros((n_types, emb_size), jnp.bfloat16),
        "gamma": jnp.ones((emb_size,), jnp.float32),
        "beta": jnp.zeros((emb_size,), jnp.float32),
    }

    src = jax.random.randint(k_src, (B, S), 0, vocab_size, dtype=jnp.int32)
    seg = jnp.concatenate(
        [jnp.ones((B, S // 2), jnp.int32), 2 * jnp.ones((B, S // 2), jnp.int32)], axis=1)
    typ = jnp.mod(jnp.arange(B * S, dtype=jnp.int32).reshape(B, S), n_types)
    pos = None  # exercise the "pos is None" branch (arange positions via BlockSpec)

    out = bert_embedding(src, seg, typ, pos, params,
                         tok_block=256, out_dtype=jnp.float32,
                         table_dtype=jnp.bfloat16)
    out = jax.block_until_ready(out)

    pos_ids = jnp.broadcast_to(jnp.arange(S, dtype=jnp.int32)[None, :], (B, S))
    ref = reference_forward(src, seg, typ, pos_ids, params)

    assert out.shape == (B, S, emb_size)
    # All gathers/sums are exact (0/1 multi-hot with f32 accumulation of bf16 values);
    # the only diffs vs the reference are f32 summation order and LN divide/sqrt ulps.
    assert jnp.allclose(out, ref, rtol=1e-3, atol=1e-3), "mismatch vs pure-JAX reference"

    # TODO(synk): nn.Dropout is a no-op at inference; training-mode dropout masks not implemented.
    print("KERNEL_OK")
</pallas_src>

<mosaic_0001>
module attributes {stable_mosaic.version = 11 : i64} {
  func.func @bert_embedding_kernel(%arg0: i32, %arg1: memref<256x3xi32, #tpu.memory_space<vmem>>, %arg2: memref<256x128xbf16, #tpu.memory_space<vmem>>, %arg3: memref<128x128xbf16, #tpu.memory_space<vmem>>, %arg4: memref<1x128xf32, #tpu.memory_space<vmem>>, %arg5: memref<1x128xf32, #tpu.memory_space<vmem>>, %arg6: memref<256x128xf32, #tpu.memory_space<vmem>>) attributes {dimension_semantics = [#tpu.dimension_semantics<parallel>], iteration_bounds = array<i64: 2>, scalar_prefetch = 0 : i64, scratch_operands = 0 : i64, tpu.core_type = #tpu.core_type<tc>, window_params = [{transform_indices = @transform_0, window_bounds = array<i64: 256, 3>}, {transform_indices = @transform_1, window_bounds = array<i64: 256, 128>}, {pipeline_mode = #tpu.pipeline_mode<synchronous>, transform_indices = @transform_2, window_bounds = array<i64: 128, 128>}, {pipeline_mode = #tpu.pipeline_mode<synchronous>, transform_indices = @transform_3, window_bounds = array<i64: 1, 128>}, {pipeline_mode = #tpu.pipeline_mode<synchronous>, transform_indices = @transform_4, window_bounds = array<i64: 1, 128>}, {transform_indices = @transform_5, window_bounds = array<i64: 256, 128>}]} {
    %c0 = arith.constant 0 : index
    %c0_0 = arith.constant 0 : index
    %0 = vector.load %arg1[%c0, %c0_0] : memref<256x3xi32, #tpu.memory_space<vmem>>, vector<256x3xi32>
    %1 = tpu.iota {dimensions = array<i32: 1>} : vector<256x128xi32>
    %2 = vector.extract_strided_slice %0 {offsets = [0, 0], sizes = [256, 1], strides = [1, 1]} : vector<256x3xi32> to vector<256x1xi32>
    %3 = vector.broadcast %2 : vector<256x1xi32> to vector<256x128xi32>
    %4 = arith.cmpi eq, %1, %3 : vector<256x128xi32>
    %5 = vector.extract_strided_slice %0 {offsets = [0, 1], sizes = [256, 1], strides = [1, 1]} : vector<256x3xi32> to vector<256x1xi32>
    %6 = vector.broadcast %5 : vector<256x1xi32> to vector<256x128xi32>
    %7 = arith.cmpi eq, %1, %6 : vector<256x128xi32>
    %8 = arith.ori %4, %7 : vector<256x128xi1>
    %9 = vector.extract_strided_slice %0 {offsets = [0, 2], sizes = [256, 1], strides = [1, 1]} : vector<256x3xi32> to vector<256x1xi32>
    %10 = vector.broadcast %9 : vector<256x1xi32> to vector<256x128xi32>
    %11 = arith.cmpi eq, %1, %10 : vector<256x128xi32>
    %12 = arith.ori %8, %11 : vector<256x128xi1>
    %13 = arith.extui %12 : vector<256x128xi1> to vector<256x128xi32>
    %14 = arith.sitofp %13 : vector<256x128xi32> to vector<256x128xf32>
    %c0_1 = arith.constant 0 : index
    %c0_2 = arith.constant 0 : index
    %15 = vector.load %arg3[%c0_1, %c0_2] : memref<128x128xbf16, #tpu.memory_space<vmem>>, vector<128x128xbf16>
    %16 = arith.truncf %14 : vector<256x128xf32> to vector<256x128xbf16>
    %cst = arith.constant dense<0.000000e+00> : vector<256x128xf32>
    %17 = tpu.matmul %16, %15, %cst {dimension_numbers = #tpu.dot_dimension_numbers<[1], [0], [0], [1], [0, 0, 1, 1], [], []>} : vector<256x128xbf16>, vector<128x128xbf16>, vector<256x128xf32> -> vector<256x128xf32>
    %c0_3 = arith.constant 0 : index
    %c0_4 = arith.constant 0 : index
    %18 = vector.load %arg2[%c0_3, %c0_4] : memref<256x128xbf16, #tpu.memory_space<vmem>>, vector<256x128xbf16>
    %19 = arith.extf %18 : vector<256x128xbf16> to vector<256x128xf32>
    %20 = arith.addf %17, %19 : vector<256x128xf32>
    %cst_5 = arith.constant dense<0.000000e+00> : vector<256xf32>
    %21 = vector.multi_reduction <add>, %20, %cst_5 [1] : vector<256x128xf32> to vector<256xf32>
    %22 = vector.shape_cast %21 : vector<256xf32> to vector<256x1xf32>
    %cst_6 = arith.constant 1.280000e+02 : f32
    %23 = vector.broadcast %cst_6 : f32 to vector<256x1xf32>
    %24 = arith.divf %22, %23 : vector<256x1xf32>
    %25 = vector.broadcast %24 : vector<256x1xf32> to vector<256x128xf32>
    %26 = arith.subf %20, %25 : vector<256x128xf32>
    %27 = arith.mulf %26, %26 : vector<256x128xf32>
    %cst_7 = arith.constant dense<0.000000e+00> : vector<256xf32>
    %28 = vector.multi_reduction <add>, %27, %cst_7 [1] : vector<256x128xf32> to vector<256xf32>
    %29 = vector.shape_cast %28 : vector<256xf32> to vector<256x1xf32>
    %cst_8 = arith.constant 1.270000e+02 : f32
    %30 = vector.broadcast %cst_8 : f32 to vector<256x1xf32>
    %31 = arith.divf %29, %30 : vector<256x1xf32>
    %c0_9 = arith.constant 0 : index
    %c0_10 = arith.constant 0 : index
    %32 = vector.load %arg4[%c0_9, %c0_10] : memref<1x128xf32, #tpu.memory_space<vmem>>, vector<1x128xf32>
    %33 = math.sqrt %31 : vector<256x1xf32>
    %cst_11 = arith.constant 9.99999997E-7 : f32
    %34 = vector.broadcast %cst_11 : f32 to vector<256x1xf32>
    %35 = arith.addf %33, %34 : vector<256x1xf32>
    %36 = vector.broadcast %35 : vector<256x1xf32> to vector<256x128xf32>
    %37 = arith.divf %26, %36 : vector<256x128xf32>
    %38 = vector.broadcast %32 : vector<1x128xf32> to vector<256x128xf32>
    %39 = arith.mulf %38, %37 : vector<256x128xf32>
    %c0_12 = arith.constant 0 : index
    %c0_13 = arith.constant 0 : index
    %40 = vector.load %arg5[%c0_12, %c0_13] : memref<1x128xf32, #tpu.memory_space<vmem>>, vector<1x128xf32>
    %41 = vector.broadcast %40 : vector<1x128xf32> to vector<256x128xf32>
    %42 = arith.addf %39, %41 : vector<256x128xf32>
    %c0_14 = arith.constant 0 : index
    %c0_15 = arith.constant 0 : index
    %43 = vector.load %arg6[%c0_14, %c0_15] : memref<256x128xf32, #tpu.memory_space<vmem>>, vector<256x128xf32>
    tpu.vector_store %arg6[%c0_14, %c0_15], %42 {strides = array<i32>} : memref<256x128xf32, #tpu.memory_space<vmem>>, vector<256x128xf32>,
    return
  }
  func.func @transform_0(%arg0: i32) -> (i32, i32) {
    %c0_i32 = arith.constant 0 : i32
    %c0_i32_0 = arith.constant 0 : i32
    return %arg0, %c0_i32 : i32, i32
  }
  func.func @transform_1(%arg0: i32) -> (i32, i32) {
    %c1_i32 = arith.constant 1 : i32
    %c0_i32 = arith.constant 0 : i32
    %0 = arith.cmpi eq, %c1_i32, %c0_i32 : i32
    %c1_i32_0 = arith.constant 1 : i32
    %1 = arith.select %0, %c1_i32_0, %c1_i32 : i32
    %2 = arith.remsi %arg0, %1 : i32
    %c0_i32_1 = arith.constant 0 : i32
    %3 = arith.cmpi ne, %2, %c0_i32_1 : i32
    %c0_i32_2 = arith.constant 0 : i32
    %4 = arith.cmpi slt, %2, %c0_i32_2 : i32
    %c0_i32_3 = arith.constant 0 : i32
    %5 = arith.cmpi slt, %1, %c0_i32_3 : i32
    %6 = arith.xori %4, %5 : i1
    %7 = arith.andi %6, %3 : i1
    %8 = arith.addi %2, %1 : i32
    %9 = arith.select %7, %8, %2 : i32
    %c0_i32_4 = arith.constant 0 : i32
    %c0_i32_5 = arith.constant 0 : i32
    return %9, %c0_i32_4 : i32, i32
  }
  func.func @transform_2(%arg0: i32) -> (i32, i32) {
    %c0_i32 = arith.constant 0 : i32
    %c0_i32_0 = arith.constant 0 : i32
    %c0_i32_1 = arith.constant 0 : i32
    return %c0_i32, %c0_i32_0 : i32, i32
  }
  func.func @transform_3(%arg0: i32) -> (i32, i32) {
    %c0_i32 = arith.constant 0 : i32
    %c0_i32_0 = arith.constant 0 : i32
    %c0_i32_1 = arith.constant 0 : i32
    return %c0_i32, %c0_i32_0 : i32, i32
  }
  func.func @transform_4(%arg0: i32) -> (i32, i32) {
    %c0_i32 = arith.constant 0 : i32
    %c0_i32_0 = arith.constant 0 : i32
    %c0_i32_1 = arith.constant 0 : i32
    return %c0_i32, %c0_i32_0 : i32, i32
  }
  func.func @transform_5(%arg0: i32) -> (i32, i32) {
    %c0_i32 = arith.constant 0 : i32
    %c0_i32_0 = arith.constant 0 : i32
    return %arg0, %c0_i32 : i32, i32
  }
}

</mosaic_0001>

<llo_original>
// kernel: tpu_custom_call.1
$region0: #{tpu_custom_call.1}
  #allocation0 [shape = 'u32[]', space=smem, size = 0x4, offset = 0x4, fixed_abs, tag = 'smem constant byte address 0x4 - core index']
  #allocation1 [shape = 'u32[144,128]{1,0:T(1,128)}', space=vmem, size = 0x12000, scoped, tag = 'internal scratch']
  %s0 = inlined_call_operand.vmem [shape: s32[512,3], index: 0, kind: input, shape index: {}]
  %s1 = inlined_call_operand.vmem [shape: bf16[512,128], index: 1, kind: input, shape index: {}]
  %s2 = inlined_call_operand.vmem [shape: bf16[128,128], index: 2, kind: input, shape index: {}]
  %s3 = inlined_call_operand.vmem [shape: f32[1,128], index: 3, kind: input, shape index: {}]
  %s4 = inlined_call_operand.vmem [shape: f32[1,128], index: 4, kind: input, shape index: {}]
  %s5 = inlined_call_operand.hbm [shape: f32[512,128], index: 5, kind: output, shape index: {}]
  %s6 = sld [smem:[#allocation0]]
  $region53: #{tpu_custom_call.1} parent=0
    _
  %s8 = ssub.s32 1, %s6
  %s9 = scalar_select 0, %s8, %s6
  $region1: #{tpu_custom_call.1} parent=0
    #allocation2 [shape = 'u8[262144]{0}', space=vmem, size = 0x40000, scoped, tag = 'output window, operand 0']
    #allocation3 [shape = 's32[2]{0}', space=sflag, size = 0x8, scoped, tag = 'scoped memory for tpu_custom_call.1']
    %10 = vsyncpa [#allocation3], 0
    %s11 = scalar_lea.sflag [#allocation3], 1
    %12 = vsyncpa %s11, 0
    loop: start=0, step=1, limit=4
    $region2: #{tpu_custom_call.1} parent=1 // loop_pre_header
      _
    $region3: #{tpu_custom_call.1} parent=1 // loop_header
      %s14 = sphi 0, %s18
      %p15 = scmp.ge.s32.totalorder %s14, 4
      %s24 = sphi 0, %s26
      %s27 = sphi 0, %s24
      %s28 = sphi 0, %s27
      %s44 = sphi 0, %s28
      %s48 = sphi 0, %s48
      %s50 = sphi 0, %s48
      %s51 = sphi 0, %s50
      %s65 = sphi 0, %s51
      %s69 = sphi 0, %s69
      %s71 = sphi 0, %s69
      %s72 = sphi 0, %s71
      %s86 = sphi 0, %s72
      %s90 = sphi 0, %s90
      %s92 = sphi 0, %s90
      %s93 = sphi 0, %s92
      %s107 = sphi 0, %s93
      %s111 = sphi 0, %s111
      %s113 = sphi 0, %s111
      %s114 = sphi 0, %s113
      %s128 = sphi 0, %s114
      %s134 = sphi 0, %s136
      %s137 = sphi 0, %s134
      %s138 = sphi 0, %s137
      %s154 = sphi 0, %s138
    $region4: #{tpu_custom_call.1} parent=1 // loop_header_branch
      %17 = sbr.rel (%p15) target = $region8
    $region5: #{tpu_custom_call.1} parent=1 // loop_body
      %s19 = ssub.s32 %s14, 1
      %s20 = ssub.s32 %s14, 2
      %s21 = sadd.s32 %s14, 1
      %s22 = ssub.s32 %s14, %s21
      %p23 = scmp.eq.s32.totalorder %s22, 0
      %s25 = sadd.s32 %s24, 1
      %s26 = scalar_select %p23, %s24, %s25
      %p29 = pneg %p23
      %p30 = scmp.eq.s32.totalorder %s14, 1
      %p31 = por %p29, %p30
      %p32 = scmp.ne.s32.totalorder %s24, %s27
      %p33 = scmp.eq.s32.totalorder %s14, 0
      %p34 = por %p32, %p33
      %p35 = scmp.ne.s32.totalorder %s24, %s27
      %p36 = scmp.eq.s32.totalorder %s19, 1
      %p37 = por %p35, %p36
      %p38 = scmp.ne.s32.totalorder %s27, %s28
      %p39 = scmp.eq.s32.totalorder %s19, 0
      %p40 = por %p38, %p39
      %p41 = scmp.ne.s32.totalorder %s27, %s28
      %p42 = scmp.eq.s32.totalorder %s20, 1
      %p43 = por %p41, %p42
      %p45 = scmp.ne.s32.totalorder %s28, %s44
      %p46 = scmp.eq.s32.totalorder %s20, 0
      %p47 = por %p45, %p46
      %s49 = sadd.s32 %s48, 1
      %p52 = scmp.eq.s32.totalorder %s14, 1
      %p53 = scmp.ne.s32.totalorder %s48, %s50
      %p54 = scmp.eq.s32.totalorder %s14, 0
      %p55 = por %p53, %p54
      %p56 = scmp.ne.s32.totalorder %s48, %s50
      %p57 = scmp.eq.s32.totalorder %s19, 1
      %p58 = por %p56, %p57
      %p59 = scmp.ne.s32.totalorder %s50, %s51
      %p60 = scmp.eq.s32.totalorder %s19, 0
      %p61 = por %p59, %p60
      %p62 = scmp.ne.s32.totalorder %s50, %s51
      %p63 = scmp.eq.s32.totalorder %s20, 1
      %p64 = por %p62, %p63
      %p66 = scmp.ne.s32.totalorder %s51, %s65
      %p67 = scmp.eq.s32.totalorder %s20, 0
      %p68 = por %p66, %p67
      %s70 = sadd.s32 %s69, 1
      %p73 = scmp.eq.s32.totalorder %s14, 1
      %p74 = scmp.ne.s32.totalorder %s69, %s71
      %p75 = scmp.eq.s32.totalorder %s14, 0
      %p76 = por %p74, %p75
      %p77 = scmp.ne.s32.totalorder %s69, %s71
      %p78 = scmp.eq.s32.totalorder %s19, 1
      %p79 = por %p77, %p78
      %p80 = scmp.ne.s32.totalorder %s71, %s72
      %p81 = scmp.eq.s32.totalorder %s19, 0
      %p82 = por %p80, %p81
      %p83 = scmp.ne.s32.totalorder %s71, %s72
      %p84 = scmp.eq.s32.totalorder %s20, 1
      %p85 = por %p83, %p84
      %p87 = scmp.ne.s32.totalorder %s72, %s86
      %p88 = scmp.eq.s32.totalorder %s20, 0
      %p89 = por %p87, %p88
      %s91 = sadd.s32 %s90, 1
      %p94 = scmp.eq.s32.totalorder %s14, 1
      %p95 = scmp.ne.s32.totalorder %s90, %s92
      %p96 = scmp.eq.s32.totalorder %s14, 0
      %p97 = por %p95, %p96
      %p98 = scmp.ne.s32.totalorder %s90, %s92
      %p99 = scmp.eq.s32.totalorder %s19, 1
      %p100 = por %p98, %p99
      %p101 = scmp.ne.s32.totalorder %s92, %s93
      %p102 = scmp.eq.s32.totalorder %s19, 0
      %p103 = por %p101, %p102
      %p104 = scmp.ne.s32.totalorder %s92, %s93
      %p105 = scmp.eq.s32.totalorder %s20, 1
      %p106 = por %p104, %p105
      %p108 = scmp.ne.s32.totalorder %s93, %s107
      %p109 = scmp.eq.s32.totalorder %s20, 0
      %p110 = por %p108, %p109
      %s112 = sadd.s32 %s111, 1
      %p115 = scmp.eq.s32.totalorder %s14, 1
      %p116 = scmp.ne.s32.totalorder %s111, %s113
      %p117 = scmp.eq.s32.totalorder %s14, 0
      %p118 = por %p116, %p117
      %p119 = scmp.ne.s32.totalorder %s111, %s113
      %p120 = scmp.eq.s32.totalorder %s19, 1
      %p121 = por %p119, %p120
      %p122 = scmp.ne.s32.totalorder %s113, %s114
      %p123 = scmp.eq.s32.totalorder %s19, 0
      %p124 = por %p122, %p123
      %p125 = scmp.ne.s32.totalorder %s113, %s114
      %p126 = scmp.eq.s32.totalorder %s20, 1
      %p127 = por %p125, %p126
      %p129 = scmp.ne.s32.totalorder %s114, %s128
      %p130 = scmp.eq.s32.totalorder %s20, 0
      %p131 = por %p129, %p130
      %s132 = ssub.s32 %s14, %s21
      %p133 = scmp.eq.s32.totalorder %s132, 0
      %s135 = sadd.s32 %s134, 1
      %s136 = scalar_select %p133, %s134, %s135
      %p139 = pneg %p133
      %p140 = scmp.eq.s32.totalorder %s14, 1
      %p141 = por %p139, %p140
      %p142 = scmp.ne.s32.totalorder %s134, %s137
      %p143 = scmp.eq.s32.totalorder %s14, 0
      %p144 = por %p142, %p143
      %p145 = scmp.ne.s32.totalorder %s134, %s137
      %p146 = scmp.eq.s32.totalorder %s19, 1
      %p147 = por %p145, %p146
      %p148 = scmp.ne.s32.totalorder %s137, %s138
      %p149 = scmp.eq.s32.totalorder %s19, 0
      %p150 = por %p148, %p149
      %p151 = scmp.ne.s32.totalorder %s137, %s138
      %p152 = scmp.eq.s32.totalorder %s20, 1
      %p153 = por %p151, %p152
      %p155 = scmp.ne.s32.totalorder %s138, %s154
      %p156 = scmp.eq.s32.totalorder %s20, 0
      %p157 = por %p155, %p156
      %p158 = scmp.le.s32.totalorder 1, %s14
      %p159 = scmp.lt.s32.totalorder %s14, 3
      %p160 = pnand %p158, %p159
      %p161 = pneg %p160
      // Predicated region
      $region9: #{tpu_custom_call.1} parent=5 // pred_check
        _
      $region10: #{tpu_custom_call.1} parent=5 // pred_check_branch
        %163 = sbr.rel (%p160) target = $region12
      $region11: #{tpu_custom_call.1} parent=5 // pred_region
        %s164 = ssub.s32 %s14, 1
        // Predicated region
        $region13: #{tpu_custom_call.1} parent=11 // pred_check
          %p165 = pneg %p61
        $region14: #{tpu_custom_call.1} parent=11 // pred_check_branch
          %167 = sbr.rel (%p165) target = $region16
        $region15: #{tpu_custom_call.1} parent=11 // pred_region
          _
        $region16: #{tpu_custom_call.1} parent=11 // pred_fallthru
          _
        // Predicated region
        $region17: #{tpu_custom_call.1} parent=11 // pred_check
          %p168 = pneg %p82
        $region18: #{tpu_custom_call.1} parent=11 // pred_check_branch
          %170 = sbr.rel (%p168) target = $region20
        $region19: #{tpu_custom_call.1} parent=11 // pred_region
          _
        $region20: #{tpu_custom_call.1} parent=11 // pred_fallthru
          _
        // Predicated region
        $region21: #{tpu_custom_call.1} parent=11 // pred_check
          %p171 = pneg %p103
        $region22: #{tpu_custom_call.1} parent=11 // pred_check_branch
          %173 = sbr.rel (%p171) target = $region24
        $region23: #{tpu_custom_call.1} parent=11 // pred_region
          _
        $region24: #{tpu_custom_call.1} parent=11 // pred_fallthru
          _
        // Predicated region
        $region25: #{tpu_custom_call.1} parent=11 // pred_check
          %p174 = pneg %p124
        $region26: #{tpu_custom_call.1} parent=11 // pred_check_branch
          %176 = sbr.rel (%p174) target = $region28
        $region27: #{tpu_custom_call.1} parent=11 // pred_region
          _
        $region28: #{tpu_custom_call.1} parent=11 // pred_fallthru
          _
      $region12: #{tpu_custom_call.1} parent=5 // pred_fallthru
        _
      %p177 = scmp.lt.s32.totalorder %s14, 2
      // Predicated region
      $region29: #{tpu_custom_call.1} parent=5 // pred_check
        %p178 = pneg %p177
      $region30: #{tpu_custom_call.1} parent=5 // pred_check_branch
        %180 = sbr.rel (%p178) target = $region32
      $region31: #{tpu_custom_call.1} parent=5 // pred_region
        // Predicated region
        $region33: #{tpu_custom_call.1} parent=31 // pred_check
          %p181 = pneg %p34
        $region34: #{tpu_custom_call.1} parent=31 // pred_check_branch
          %183 = sbr.rel (%p181) target = $region36
        $region35: #{tpu_custom_call.1} parent=31 // pred_region
          %s184 = smul.u32 32, %s14
          %p185 = scmp.lt.s32.totalorder %s184, 63
          %s186 = scalar_select %p185, %s184, 63
          %s187 = smul.addr %s186, 8
          %s188 = scalar_lea.vmem %s0, %s187
          %s189 = smul.u32 32, %s14
        $region36: #{tpu_custom_call.1} parent=31 // pred_fallthru
          _
      $region32: #{tpu_custom_call.1} parent=5 // pred_fallthru
        _
      %p190 = scmp.le.s32.totalorder 1, %s14
      %p191 = scmp.lt.s32.totalorder %s14, 3
      %p192 = pnand %p190, %p191
      %p193 = pneg %p192
      // Predicated region
      $region37: #{tpu_custom_call.1} parent=5 // pred_check
        _
      $region38: #{tpu_custom_call.1} parent=5 // pred_check_branch
        %195 = sbr.rel (%p192) target = $region40
      $region39: #{tpu_custom_call.1} parent=5 // pred_region
        %s196 = ssub.s32 %s14, 1
        %s197 = smul.u32 32, %s19
        %p198 = scmp.lt.s32.totalorder %s197, 63
        %s199 = scalar_select %p198, %s197, 63
        %s200 = smul.addr %s199, 8
        %s201 = scalar_lea.vmem %s0, %s200
        %p202 = pneg %p40
        %p203 = pneg %p37
        %p204 = pneg %p61
        %p205 = pneg %p58
        %p206 = pneg %p82
        %p207 = pneg %p79
        %p208 = pneg %p103
        %p209 = pneg %p100
        %p210 = pneg %p124
        %p211 = pneg %p121
        %p212 = pneg %p150
        %p213 = pneg %p147
        %s214 = sand.u32 %s137, 1
        %s215 = scalar_lea.sflag [#allocation3], %s214
        %s216 = sand.u32 %s137, 1
        %s217 = smul.addr %s216, 256
        %s218 = scalar_lea.vmem [#allocation2], %s217
        %s219 = smul.u32 32, %s19
        %p220 = scmp.lt.s32.totalorder %s219, 63
        %s221 = scalar_select %p220, %s219, 63
        %s222 = smul.addr %s221, 8
        %s223 = scalar_lea.vmem %s0, %s222
        %s224 = smul.u32 32, %s19
        %s225 = smul.u32 32, %s19
        %v227 = vld [vmem:[%s223] sm:$0xff]
        %v228 = vld [vmem:[%s223 + $0x8] sm:$0xff]
        %v229 = vld [vmem:[%s223 + $0x10] sm:$0xff]
        %v230 = vld [vmem:[%s223 + $0x18] sm:$0xff]
        %v231 = vld [vmem:[%s223 + $0x20] sm:$0xff]
        %v232 = vld [vmem:[%s223 + $0x28] sm:$0xff]
        %v233 = vld [vmem:[%s223 + $0x30] sm:$0xff]
        %v234 = vld [vmem:[%s223 + $0x38] sm:$0xff]
        %v235 = vld [vmem:[%s223 + $0x40] sm:$0xff]
        %v236 = vld [vmem:[%s223 + $0x48] sm:$0xff]
        %v237 = vld [vmem:[%s223 + $0x50] sm:$0xff]
        %v238 = vld [vmem:[%s223 + $0x58] sm:$0xff]
        %v239 = vld [vmem:[%s223 + $0x60] sm:$0xff]
        %v240 = vld [vmem:[%s223 + $0x68] sm:$0xff]
        %v241 = vld [vmem:[%s223 + $0x70] sm:$0xff]
        %v242 = vld [vmem:[%s223 + $0x78] sm:$0xff]
        %v243 = vld [vmem:[%s223 + $0x80] sm:$0xff]
        %v244 = vld [vmem:[%s223 + $0x88] sm:$0xff]
        %v245 = vld [vmem:[%s223 + $0x90] sm:$0xff]
        %v246 = vld [vmem:[%s223 + $0x98] sm:$0xff]
        %v247 = vld [vmem:[%s223 + $0xa0] sm:$0xff]
        %v248 = vld [vmem:[%s223 + $0xa8] sm:$0xff]
        %v249 = vld [vmem:[%s223 + $0xb0] sm:$0xff]
        %v250 = vld [vmem:[%s223 + $0xb8] sm:$0xff]
        %v251 = vld [vmem:[%s223 + $0xc0] sm:$0xff]
        %v252 = vld [vmem:[%s223 + $0xc8] sm:$0xff]
        %v253 = vld [vmem:[%s223 + $0xd0] sm:$0xff]
        %v254 = vld [vmem:[%s223 + $0xd8] sm:$0xff]
        %v255 = vld [vmem:[%s223 + $0xe0] sm:$0xff]
        %v256 = vld [vmem:[%s223 + $0xe8] sm:$0xff]
        %v257 = vld [vmem:[%s223 + $0xf0] sm:$0xff]
        %v258 = vld [vmem:[%s223 + $0xf8] sm:$0xff]
        %v259 = vlaneseq
        %v260 = vand.u32 %v259, 127
        %261 = vset.pattern.permute.xlu0 0
        %262 = vperm.xlu0 %261, %v227
        %v263 = vpop.permute.xlu0 %262
        %264 = vset.pattern.permute.xlu0 0
        %265 = vperm.xlu0 %264, %v228
        %v266 = vpop.permute.xlu0 %265
        %267 = vset.pattern.permute.xlu0 0
        %268 = vperm.xlu0 %267, %v229
        %v269 = vpop.permute.xlu0 %268
        %270 = vset.pattern.permute.xlu0 0
        %271 = vperm.xlu0 %270, %v230
        %v272 = vpop.permute.xlu0 %271
        %273 = vset.pattern.permute.xlu0 0
        %274 = vperm.xlu0 %273, %v231
        %v275 = vpop.permute.xlu0 %274
        %276 = vset.pattern.permute.xlu0 0
        %277 = vperm.xlu0 %276, %v232
        %v278 = vpop.permute.xlu0 %277
        %279 = vset.pattern.permute.xlu0 0
        %280 = vperm.xlu0 %279, %v233
        %v281 = vpop.permute.xlu0 %280
        %282 = vset.pattern.permute.xlu0 0
        %283 = vperm.xlu0 %282, %v234
        %v284 = vpop.permute.xlu0 %283
        %285 = vset.pattern.permute.xlu0 0
        %286 = vperm.xlu0 %285, %v235
        %v287 = vpop.permute.xlu0 %286
        %288 = vset.pattern.permute.xlu0 0
        %289 = vperm.xlu0 %288, %v236
        %v290 = vpop.permute.xlu0 %289
        %291 = vset.pattern.permute.xlu0 0
        %292 = vperm.xlu0 %291, %v237
        %v293 = vpop.permute.xlu0 %292
        %294 = vset.pattern.permute.xlu0 0
        %295 = vperm.xlu0 %294, %v238
        %v296 = vpop.permute.xlu0 %295
        %297 = vset.pattern.permute.xlu0 0
        %298 = vperm.xlu0 %297, %v239
        %v299 = vpop.permute.xlu0 %298
        %300 = vset.pattern.permute.xlu0 0
        %301 = vperm.xlu0 %300, %v240
        %v302 = vpop.permute.xlu0 %301
        %303 = vset.pattern.permute.xlu0 0
        %304 = vperm.xlu0 %303, %v241
        %v305 = vpop.permute.xlu0 %304
        %306 = vset.pattern.permute.xlu0 0
        %307 = vperm.xlu0 %306, %v242
        %v308 = vpop.permute.xlu0 %307
        %309 = vset.pattern.permute.xlu0 0
        %310 = vperm.xlu0 %309, %v243
        %v311 = vpop.permute.xlu0 %310
        %312 = vset.pattern.permute.xlu0 0
        %313 = vperm.xlu0 %312, %v244
        %v314 = vpop.permute.xlu0 %313
        %315 = vset.pattern.permute.xlu0 0
        %316 = vperm.xlu0 %315, %v245
        %v317 = vpop.permute.xlu0 %316
        %318 = vset.pattern.permute.xlu0 0
        %319 = vperm.xlu0 %318, %v246
        %v320 = vpop.permute.xlu0 %319
        %321 = vset.pattern.permute.xlu0 0
        %322 = vperm.xlu0 %321, %v247
        %v323 = vpop.permute.xlu0 %322
        %324 = vset.pattern.permute.xlu0 0
        %325 = vperm.xlu0 %324, %v248
        %v326 = vpop.permute.xlu0 %325
        %327 = vset.pattern.permute.xlu0 0
        %328 = vperm.xlu0 %327, %v249
        %v329 = vpop.permute.xlu0 %328
        %330 = vset.pattern.permute.xlu0 0
        %331 = vperm.xlu0 %330, %v250
        %v332 = vpop.permute.xlu0 %331
        %333 = vset.pattern.permute.xlu0 0
        %334 = vperm.xlu0 %333, %v251
        %v335 = vpop.permute.xlu0 %334
        %336 = vset.pattern.permute.xlu0 0
        %337 = vperm.xlu0 %336, %v252
        %v338 = vpop.permute.xlu0 %337
        %339 = vset.pattern.permute.xlu0 0
        %340 = vperm.xlu0 %339, %v253
        %v341 = vpop.permute.xlu0 %340
        %342 = vset.pattern.permute.xlu0 0
        %343 = vperm.xlu0 %342, %v254
        %v344 = vpop.permute.xlu0 %343
        %345 = vset.pattern.permute.xlu0 0
        %346 = vperm.xlu0 %345, %v255
        %v347 = vpop.permute.xlu0 %346
        %348 = vset.pattern.permute.xlu0 0
        %349 = vperm.xlu0 %348, %v256
        %v350 = vpop.permute.xlu0 %349
        %351 = vset.pattern.permute.xlu0 0
        %352 = vperm.xlu0 %351, %v257
        %v353 = vpop.permute.xlu0 %352
        %354 = vset.pattern.permute.xlu0 0
        %355 = vperm.xlu0 %354, %v258
        %v356 = vpop.permute.xlu0 %355
        %vm357 = vcmp.eq.s32.totalorder %v260, %v263
        %vm358 = vcmp.eq.s32.totalorder %v260, %v266
        %vm359 = vcmp.eq.s32.totalorder %v260, %v269
        %vm360 = vcmp.eq.s32.totalorder %v260, %v272
        %vm361 = vcmp.eq.s32.totalorder %v260, %v275
        %vm362 = vcmp.eq.s32.totalorder %v260, %v278
        %vm363 = vcmp.eq.s32.totalorder %v260, %v281
        %vm364 = vcmp.eq.s32.totalorder %v260, %v284
        %vm365 = vcmp.eq.s32.totalorder %v260, %v287
        %vm366 = vcmp.eq.s32.totalorder %v260, %v290
        %vm367 = vcmp.eq.s32.totalorder %v260, %v293
        %vm368 = vcmp.eq.s32.totalorder %v260, %v296
        %vm369 = vcmp.eq.s32.totalorder %v260, %v299
        %vm370 = vcmp.eq.s32.totalorder %v260, %v302
        %vm371 = vcmp.eq.s32.totalorder %v260, %v305
        %vm372 = vcmp.eq.s32.totalorder %v260, %v308
        %vm373 = vcmp.eq.s32.totalorder %v260, %v311
        %vm374 = vcmp.eq.s32.totalorder %v260, %v314
        %vm375 = vcmp.eq.s32.totalorder %v260, %v317
        %vm376 = vcmp.eq.s32.totalorder %v260, %v320
        %vm377 = vcmp.eq.s32.totalorder %v260, %v323
        %vm378 = vcmp.eq.s32.totalorder %v260, %v326
        %vm379 = vcmp.eq.s32.totalorder %v260, %v329
        %vm380 = vcmp.eq.s32.totalorder %v260, %v332
        %vm381 = vcmp.eq.s32.totalorder %v260, %v335
        %vm382 = vcmp.eq.s32.totalorder %v260, %v338
        %vm383 = vcmp.eq.s32.totalorder %v260, %v341
        %vm384 = vcmp.eq.s32.totalorder %v260, %v344
        %vm385 = vcmp.eq.s32.totalorder %v260, %v347
        %vm386 = vcmp.eq.s32.totalorder %v260, %v350
        %vm387 = vcmp.eq.s32.totalorder %v260, %v353
        %vm388 = vcmp.eq.s32.totalorder %v260, %v356
        %389 = vset.pattern.permute.xlu0 1
        %390 = vperm.xlu0 %389, %v227
        %v391 = vpop.permute.xlu0 %390
        %392 = vset.pattern.permute.xlu0 1
        %393 = vperm.xlu0 %392, %v228
        %v394 = vpop.permute.xlu0 %393
        %395 = vset.pattern.permute.xlu0 1
        %396 = vperm.xlu0 %395, %v229
        %v397 = vpop.permute.xlu0 %396
        %398 = vset.pattern.permute.xlu0 1
        %399 = vperm.xlu0 %398, %v230
        %v400 = vpop.permute.xlu0 %399
        %401 = vset.pattern.permute.xlu0 1
        %402 = vperm.xlu0 %401, %v231
        %v403 = vpop.permute.xlu0 %402
        %404 = vset.pattern.permute.xlu0 1
        %405 = vperm.xlu0 %404, %v232
        %v406 = vpop.permute.xlu0 %405
        %407 = vset.pattern.permute.xlu0 1
        %408 = vperm.xlu0 %407, %v233
        %v409 = vpop.permute.xlu0 %408
        %410 = vset.pattern.permute.xlu0 1
        %411 = vperm.xlu0 %410, %v234
        %v412 = vpop.permute.xlu0 %411
        %413 = vset.pattern.permute.xlu0 1
        %414 = vperm.xlu0 %413, %v235
        %v415 = vpop.permute.xlu0 %414
        %416 = vset.pattern.permute.xlu0 1
        %417 = vperm.xlu0 %416, %v236
        %v418 = vpop.permute.xlu0 %417
        %419 = vset.pattern.permute.xlu0 1
        %420 = vperm.xlu0 %419, %v237
        %v421 = vpop.permute.xlu0 %420
        %422 = vset.pattern.permute.xlu0 1
        %423 = vperm.xlu0 %422, %v238
        %v424 = vpop.permute.xlu0 %423
        %425 = vset.pattern.permute.xlu0 1
        %426 = vperm.xlu0 %425, %v239
        %v427 = vpop.permute.xlu0 %426
        %428 = vset.pattern.permute.xlu0 1
        %429 = vperm.xlu0 %428, %v240
        %v430 = vpop.permute.xlu0 %429
        %431 = vset.pattern.permute.xlu0 1
        %432 = vperm.xlu0 %431, %v241
        %v433 = vpop.permute.xlu0 %432
        %434 = vset.pattern.permute.xlu0 1
        %435 = vperm.xlu0 %434, %v242
        %v436 = vpop.permute.xlu0 %435
        %437 = vset.pattern.permute.xlu0 1
        %438 = vperm.xlu0 %437, %v243
        %v439 = vpop.permute.xlu0 %438
        %440 = vset.pattern.permute.xlu0 1
        %441 = vperm.xlu0 %440, %v244
        %v442 = vpop.permute.xlu0 %441
        %443 = vset.pattern.permute.xlu0 1
        %444 = vperm.xlu0 %443, %v245
        %v445 = vpop.permute.xlu0 %444
        %446 = vset.pattern.permute.xlu0 1
        %447 = vperm.xlu0 %446, %v246
        %v448 = vpop.permute.xlu0 %447
        %449 = vset.pattern.permute.xlu0 1
        %450 = vperm.xlu0 %449, %v247
        %v451 = vpop.permute.xlu0 %450
        %452 = vset.pattern.permute.xlu0 1
        %453 = vperm.xlu0 %452, %v248
        %v454 = vpop.permute.xlu0 %453
        %455 = vset.pattern.permute.xlu0 1
        %456 = vperm.xlu0 %455, %v249
        %v457 = vpop.permute.xlu0 %456
        %458 = vset.pattern.permute.xlu0 1
        %459 = vperm.xlu0 %458, %v250
        %v460 = vpop.permute.xlu0 %459
        %461 = vset.pattern.permute.xlu0 1
        %462 = vperm.xlu0 %461, %v251
        %v463 = vpop.permute.xlu0 %462
        %464 = vset.pattern.permute.xlu0 1
        %465 = vperm.xlu0 %464, %v252
        %v466 = vpop.permute.xlu0 %465
        %467 = vset.pattern.permute.xlu0 1
        %468 = vperm.xlu0 %467, %v253
        %v469 = vpop.permute.xlu0 %468
        %470 = vset.pattern.permute.xlu0 1
        %471 = vperm.xlu0 %470, %v254
        %v472 = vpop.permute.xlu0 %471
        %473 = vset.pattern.permute.xlu0 1
        %474 = vperm.xlu0 %473, %v255
        %v475 = vpop.permute.xlu0 %474
        %476 = vset.pattern.permute.xlu0 1
        %477 = vperm.xlu0 %476, %v256
        %v478 = vpop.permute.xlu0 %477
        %479 = vset.pattern.permute.xlu0 1
        %480 = vperm.xlu0 %479, %v257
        %v481 = vpop.permute.xlu0 %480
        %482 = vset.pattern.permute.xlu0 1
        %483 = vperm.xlu0 %482, %v258
        %v484 = vpop.permute.xlu0 %483
        %vm485 = vcmp.eq.s32.totalorder %v260, %v391
        %vm486 = vcmp.eq.s32.totalorder %v260, %v394
        %vm487 = vcmp.eq.s32.totalorder %v260, %v397
        %vm488 = vcmp.eq.s32.totalorder %v260, %v400
        %vm489 = vcmp.eq.s32.totalorder %v260, %v403
        %vm490 = vcmp.eq.s32.totalorder %v260, %v406
        %vm491 = vcmp.eq.s32.totalorder %v260, %v409
        %vm492 = vcmp.eq.s32.totalorder %v260, %v412
        %vm493 = vcmp.eq.s32.totalorder %v260, %v415
        %vm494 = vcmp.eq.s32.totalorder %v260, %v418
        %vm495 = vcmp.eq.s32.totalorder %v260, %v421
        %vm496 = vcmp.eq.s32.totalorder %v260, %v424
        %vm497 = vcmp.eq.s32.totalorder %v260, %v427
        %vm498 = vcmp.eq.s32.totalorder %v260, %v430
        %vm499 = vcmp.eq.s32.totalorder %v260, %v433
        %vm500 = vcmp.eq.s32.totalorder %v260, %v436
        %vm501 = vcmp.eq.s32.totalorder %v260, %v439
        %vm502 = vcmp.eq.s32.totalorder %v260, %v442
        %vm503 = vcmp.eq.s32.totalorder %v260, %v445
        %vm504 = vcmp.eq.s32.totalorder %v260, %v448
        %vm505 = vcmp.eq.s32.totalorder %v260, %v451
        %vm506 = vcmp.eq.s32.totalorder %v260, %v454
        %vm507 = vcmp.eq.s32.totalorder %v260, %v457
        %vm508 = vcmp.eq.s32.totalorder %v260, %v460
        %vm509 = vcmp.eq.s32.totalorder %v260, %v463
        %vm510 = vcmp.eq.s32.totalorder %v260, %v466
        %vm511 = vcmp.eq.s32.totalorder %v260, %v469
        %vm512 = vcmp.eq.s32.totalorder %v260, %v472
        %vm513 = vcmp.eq.s32.totalorder %v260, %v475
        %vm514 = vcmp.eq.s32.totalorder %v260, %v478
        %vm515 = vcmp.eq.s32.totalorder %v260, %v481
        %vm516 = vcmp.eq.s32.totalorder %v260, %v484
        %vm517 = vmor %vm357, %vm485
        %vm518 = vmor %vm358, %vm486
        %vm519 = vmor %vm359, %vm487
        %vm520 = vmor %vm360, %vm488
        %vm521 = vmor %vm361, %vm489
        %vm522 = vmor %vm362, %vm490
        %vm523 = vmor %vm363, %vm491
        %vm524 = vmor %vm364, %vm492
        %vm525 = vmor %vm365, %vm493
        %vm526 = vmor %vm366, %vm494
        %vm527 = vmor %vm367, %vm495
        %vm528 = vmor %vm368, %vm496
        %vm529 = vmor %vm369, %vm497
        %vm530 = vmor %vm370, %vm498
        %vm531 = vmor %vm371, %vm499
        %vm532 = vmor %vm372, %vm500
        %vm533 = vmor %vm373, %vm501
        %vm534 = vmor %vm374, %vm502
        %vm535 = vmor %vm375, %vm503
        %vm536 = vmor %vm376, %vm504
        %vm537 = vmor %vm377, %vm505
        %vm538 = vmor %vm378, %vm506
        %vm539 = vmor %vm379, %vm507
        %vm540 = vmor %vm380, %vm508
        %vm541 = vmor %vm381, %vm509
        %vm542 = vmor %vm382, %vm510
        %vm543 = vmor %vm383, %vm511
        %vm544 = vmor %vm384, %vm512
        %vm545 = vmor %vm385, %vm513
        %vm546 = vmor %vm386, %vm514
        %vm547 = vmor %vm387, %vm515
        %vm548 = vmor %vm388, %vm516
        %549 = vset.pattern.permute.xlu0 2
        %550 = vperm.xlu0 %549, %v227
        %v551 = vpop.permute.xlu0 %550
        %552 = vset.pattern.permute.xlu0 2
        %553 = vperm.xlu0 %552, %v228
        %v554 = vpop.permute.xlu0 %553
        %555 = vset.pattern.permute.xlu0 2
        %556 = vperm.xlu0 %555, %v229
        %v557 = vpop.permute.xlu0 %556
        %558 = vset.pattern.permute.xlu0 2
        %559 = vperm.xlu0 %558, %v230
        %v560 = vpop.permute.xlu0 %559
        %561 = vset.pattern.permute.xlu0 2
        %562 = vperm.xlu0 %561, %v231
        %v563 = vpop.permute.xlu0 %562
        %564 = vset.pattern.permute.xlu0 2
        %565 = vperm.xlu0 %564, %v232
        %v566 = vpop.permute.xlu0 %565
        %567 = vset.pattern.permute.xlu0 2
        %568 = vperm.xlu0 %567, %v233
        %v569 = vpop.permute.xlu0 %568
        %570 = vset.pattern.permute.xlu0 2
        %571 = vperm.xlu0 %570, %v234
        %v572 = vpop.permute.xlu0 %571
        %573 = vset.pattern.permute.xlu0 2
        %574 = vperm.xlu0 %573, %v235
        %v575 = vpop.permute.xlu0 %574
        %576 = vset.pattern.permute.xlu0 2
        %577 = vperm.xlu0 %576, %v236
        %v578 = vpop.permute.xlu0 %577
        %579 = vset.pattern.permute.xlu0 2
        %580 = vperm.xlu0 %579, %v237
        %v581 = vpop.permute.xlu0 %580
        %582 = vset.pattern.permute.xlu0 2
        %583 = vperm.xlu0 %582, %v238
        %v584 = vpop.permute.xlu0 %583
        %585 = vset.pattern.permute.xlu0 2
        %586 = vperm.xlu0 %585, %v239
        %v587 = vpop.permute.xlu0 %586
        %588 = vset.pattern.permute.xlu0 2
        %589 = vperm.xlu0 %588, %v240
        %v590 = vpop.permute.xlu0 %589
        %591 = vset.pattern.permute.xlu0 2
        %592 = vperm.xlu0 %591, %v241
        %v593 = vpop.permute.xlu0 %592
        %594 = vset.pattern.permute.xlu0 2
        %595 = vperm.xlu0 %594, %v242
        %v596 = vpop.permute.xlu0 %595
        %597 = vset.pattern.permute.xlu0 2
        %598 = vperm.xlu0 %597, %v243
        %v599 = vpop.permute.xlu0 %598
        %600 = vset.pattern.permute.xlu0 2
        %601 = vperm.xlu0 %600, %v244
        %v602 = vpop.permute.xlu0 %601
        %603 = vset.pattern.permute.xlu0 2
        %604 = vperm.xlu0 %603, %v245
        %v605 = vpop.permute.xlu0 %604
        %606 = vset.pattern.permute.xlu0 2
        %607 = vperm.xlu0 %606, %v246
        %v608 = vpop.permute.xlu0 %607
        %609 = vset.pattern.permute.xlu0 2
        %610 = vperm.xlu0 %609, %v247
        %v611 = vpop.permute.xlu0 %610
        %612 = vset.pattern.permute.xlu0 2
        %613 = vperm.xlu0 %612, %v248
        %v614 = vpop.permute.xlu0 %613
        %615 = vset.pattern.permute.xlu0 2
        %616 = vperm.xlu0 %615, %v249
        %v617 = vpop.permute.xlu0 %616
        %618 = vset.pattern.permute.xlu0 2
        %619 = vperm.xlu0 %618, %v250
        %v620 = vpop.permute.xlu0 %619
        %621 = vset.pattern.permute.xlu0 2
        %622 = vperm.xlu0 %621, %v251
        %v623 = vpop.permute.xlu0 %622
        %624 = vset.pattern.permute.xlu0 2
        %625 = vperm.xlu0 %624, %v252
        %v626 = vpop.permute.xlu0 %625
        %627 = vset.pattern.permute.xlu0 2
        %628 = vperm.xlu0 %627, %v253
        %v629 = vpop.permute.xlu0 %628
        %630 = vset.pattern.permute.xlu0 2
        %631 = vperm.xlu0 %630, %v254
        %v632 = vpop.permute.xlu0 %631
        %633 = vset.pattern.permute.xlu0 2
        %634 = vperm.xlu0 %633, %v255
        %v635 = vpop.permute.xlu0 %634
        %636 = vset.pattern.permute.xlu0 2
        %637 = vperm.xlu0 %636, %v256
        %v638 = vpop.permute.xlu0 %637
        %639 = vset.pattern.permute.xlu0 2
        %640 = vperm.xlu0 %639, %v257
        %v641 = vpop.permute.xlu0 %640
        %642 = vset.pattern.permute.xlu0 2
        %643 = vperm.xlu0 %642, %v258
        %v644 = vpop.permute.xlu0 %643
        %vm645 = vcmp.eq.s32.totalorder %v260, %v551
        %vm646 = vcmp.eq.s32.totalorder %v260, %v554
        %vm647 = vcmp.eq.s32.totalorder %v260, %v557
        %vm648 = vcmp.eq.s32.totalorder %v260, %v560
        %vm649 = vcmp.eq.s32.totalorder %v260, %v563
        %vm650 = vcmp.eq.s32.totalorder %v260, %v566
        %vm651 = vcmp.eq.s32.totalorder %v260, %v569
        %vm652 = vcmp.eq.s32.totalorder %v260, %v572
        %vm653 = vcmp.eq.s32.totalorder %v260, %v575
        %vm654 = vcmp.eq.s32.totalorder %v260, %v578
        %vm655 = vcmp.eq.s32.totalorder %v260, %v581
        %vm656 = vcmp.eq.s32.totalorder %v260, %v584
        %vm657 = vcmp.eq.s32.totalorder %v260, %v587
        %vm658 = vcmp.eq.s32.totalorder %v260, %v590
        %vm659 = vcmp.eq.s32.totalorder %v260, %v593
        %vm660 = vcmp.eq.s32.totalorder %v260, %v596
        %vm661 = vcmp.eq.s32.totalorder %v260, %v599
        %vm662 = vcmp.eq.s32.totalorder %v260, %v602
        %vm663 = vcmp.eq.s32.totalorder %v260, %v605
        %vm664 = vcmp.eq.s32.totalorder %v260, %v608
        %vm665 = vcmp.eq.s32.totalorder %v260, %v611
        %vm666 = vcmp.eq.s32.totalorder %v260, %v614
        %vm667 = vcmp.eq.s32.totalorder %v260, %v617
        %vm668 = vcmp.eq.s32.totalorder %v260, %v620
        %vm669 = vcmp.eq.s32.totalorder %v260, %v623
        %vm670 = vcmp.eq.s32.totalorder %v260, %v626
        %vm671 = vcmp.eq.s32.totalorder %v260, %v629
        %vm672 = vcmp.eq.s32.totalorder %v260, %v632
        %vm673 = vcmp.eq.s32.totalorder %v260, %v635
        %vm674 = vcmp.eq.s32.totalorder %v260, %v638
        %vm675 = vcmp.eq.s32.totalorder %v260, %v641
        %vm676 = vcmp.eq.s32.totalorder %v260, %v644
        %vm677 = vmor %vm517, %vm645
        %vm678 = vmor %vm518, %vm646
        %vm679 = vmor %vm519, %vm647
        %vm680 = vmor %vm520, %vm648
        %vm681 = vmor %vm521, %vm649
        %vm682 = vmor %vm522, %vm650
        %vm683 = vmor %vm523, %vm651
        %vm684 = vmor %vm524, %vm652
        %vm685 = vmor %vm525, %vm653
        %vm686 = vmor %vm526, %vm654
        %vm687 = vmor %vm527, %vm655
        %vm688 = vmor %vm528, %vm656
        %vm689 = vmor %vm529, %vm657
        %vm690 = vmor %vm530, %vm658
        %vm691 = vmor %vm531, %vm659
        %vm692 = vmor %vm532, %vm660
        %vm693 = vmor %vm533, %vm661
        %vm694 = vmor %vm534, %vm662
        %vm695 = vmor %vm535, %vm663
        %vm696 = vmor %vm536, %vm664
        %vm697 = vmor %vm537, %vm665
        %vm698 = vmor %vm538, %vm666
        %vm699 = vmor %vm539, %vm667
        %vm700 = vmor %vm540, %vm668
        %vm701 = vmor %vm541, %vm669
        %vm702 = vmor %vm542, %vm670
        %vm703 = vmor %vm543, %vm671
        %vm704 = vmor %vm544, %vm672
        %vm705 = vmor %vm545, %vm673
        %vm706 = vmor %vm546, %vm674
        %vm707 = vmor %vm547, %vm675
        %vm708 = vmor %vm548, %vm676
        %v709 = vld [vmem:[%s2] sm:$0xf]
        %v710 = vld [vmem:[%s2 + $0x4] sm:$0xf]
        %v711 = vld [vmem:[%s2 + $0x8] sm:$0xf]
        %v712 = vld [vmem:[%s2 + $0xc] sm:$0xf]
        %v713 = vld [vmem:[%s2 + $0x10] sm:$0xf]
        %v714 = vld [vmem:[%s2 + $0x14] sm:$0xf]
        %v715 = vld [vmem:[%s2 + $0x18] sm:$0xf]
        %v716 = vld [vmem:[%s2 + $0x1c] sm:$0xf]
        %v717 = vld [vmem:[%s2 + $0x20] sm:$0xf]
        %v718 = vld [vmem:[%s2 + $0x24] sm:$0xf]
        %v719 = vld [vmem:[%s2 + $0x28] sm:$0xf]
        %v720 = vld [vmem:[%s2 + $0x2c] sm:$0xf]
        %v721 = vld [vmem:[%s2 + $0x30] sm:$0xf]
        %v722 = vld [vmem:[%s2 + $0x34] sm:$0xf]
        %v723 = vld [vmem:[%s2 + $0x38] sm:$0xf]
        %v724 = vld [vmem:[%s2 + $0x3c] sm:$0xf]
        %v725 = vsel %vm677, 1, 0
        %v726 = vsel %vm678, 1, 0
        %v727 = vsel %vm679, 1, 0
        %v728 = vsel %vm680, 1, 0
        %v729 = vsel %vm681, 1, 0
        %v730 = vsel %vm682, 1, 0
        %v731 = vsel %vm683, 1, 0
        %v732 = vsel %vm684, 1, 0
        %v733 = vsel %vm685, 1, 0
        %v734 = vsel %vm686, 1, 0
        %v735 = vsel %vm687, 1, 0
        %v736 = vsel %vm688, 1, 0
        %v737 = vsel %vm689, 1, 0
        %v738 = vsel %vm690, 1, 0
        %v739 = vsel %vm691, 1, 0
        %v740 = vsel %vm692, 1, 0
        %v741 = vsel %vm693, 1, 0
        %v742 = vsel %vm694, 1, 0
        %v743 = vsel %vm695, 1, 0
        %v744 = vsel %vm696, 1, 0
        %v745 = vsel %vm697, 1, 0
        %v746 = vsel %vm698, 1, 0
        %v747 = vsel %vm699, 1, 0
        %v748 = vsel %vm700, 1, 0
        %v749 = vsel %vm701, 1, 0
        %v750 = vsel %vm702, 1, 0
        %v751 = vsel %vm703, 1, 0
        %v752 = vsel %vm704, 1, 0
        %v753 = vsel %vm705, 1, 0
        %v754 = vsel %vm706, 1, 0
        %v755 = vsel %vm707, 1, 0
        %v756 = vsel %vm708, 1, 0
        %v757 = vcvt.s32.f32 %v725
        %v758 = vcvt.s32.f32 %v726
        %v759 = vcvt.s32.f32 %v727
        %v760 = vcvt.s32.f32 %v728
        %v761 = vcvt.s32.f32 %v729
        %v762 = vcvt.s32.f32 %v730
        %v763 = vcvt.s32.f32 %v731
        %v764 = vcvt.s32.f32 %v732
        %v765 = vcvt.s32.f32 %v733
        %v766 = vcvt.s32.f32 %v734
        %v767 = vcvt.s32.f32 %v735
        %v768 = vcvt.s32.f32 %v736
        %v769 = vcvt.s32.f32 %v737
        %v770 = vcvt.s32.f32 %v738
        %v771 = vcvt.s32.f32 %v739
        %v772 = vcvt.s32.f32 %v740
        %v773 = vcvt.s32.f32 %v741
        %v774 = vcvt.s32.f32 %v742
        %v775 = vcvt.s32.f32 %v743
        %v776 = vcvt.s32.f32 %v744
        %v777 = vcvt.s32.f32 %v745
        %v778 = vcvt.s32.f32 %v746
        %v779 = vcvt.s32.f32 %v747
        %v780 = vcvt.s32.f32 %v748
        %v781 = vcvt.s32.f32 %v749
        %v782 = vcvt.s32.f32 %v750
        %v783 = vcvt.s32.f32 %v751
        %v784 = vcvt.s32.f32 %v752
        %v785 = vcvt.s32.f32 %v753
        %v786 = vcvt.s32.f32 %v754
        %v787 = vcvt.s32.f32 %v755
        %v788 = vcvt.s32.f32 %v756
        %v789 = vpack.c.bf16 %v758, %v757
        %v790 = vpack.c.bf16 %v760, %v759
        %v791 = vpack.c.bf16 %v762, %v761
        %v792 = vpack.c.bf16 %v764, %v763
        %v793 = vpack.c.bf16 %v766, %v765
        %v794 = vpack.c.bf16 %v768, %v767
        %v795 = vpack.c.bf16 %v770, %v769
        %v796 = vpack.c.bf16 %v772, %v771
        %v797 = vpack.c.bf16 %v774, %v773
        %v798 = vpack.c.bf16 %v776, %v775
        %v799 = vpack.c.bf16 %v778, %v777
        %v800 = vpack.c.bf16 %v780, %v779
        %v801 = vpack.c.bf16 %v782, %v781
        %v802 = vpack.c.bf16 %v784, %v783
        %v803 = vpack.c.bf16 %v786, %v785
        %v804 = vpack.c.bf16 %v788, %v787
        %v805 = vld [vmem:[%s1] sm:$0xf]
        %v806 = vld [vmem:[%s1 + $0x4] sm:$0xf]
        %v807 = vld [vmem:[%s1 + $0x8] sm:$0xf]
        %v808 = vld [vmem:[%s1 + $0xc] sm:$0xf]
        %v809 = vld [vmem:[%s1 + $0x10] sm:$0xf]
        %v810 = vld [vmem:[%s1 + $0x14] sm:$0xf]
        %v811 = vld [vmem:[%s1 + $0x18] sm:$0xf]
        %v812 = vld [vmem:[%s1 + $0x1c] sm:$0xf]
        %v813 = vld [vmem:[%s1 + $0x20] sm:$0xf]
        %v814 = vld [vmem:[%s1 + $0x24] sm:$0xf]
        %v815 = vld [vmem:[%s1 + $0x28] sm:$0xf]
        %v816 = vld [vmem:[%s1 + $0x2c] sm:$0xf]
        %v817 = vld [vmem:[%s1 + $0x30] sm:$0xf]
        %v818 = vld [vmem:[%s1 + $0x34] sm:$0xf]
        %v819 = vld [vmem:[%s1 + $0x38] sm:$0xf]
        %v820 = vld [vmem:[%s1 + $0x3c] sm:$0xf]
        %v821 = vld [vmem:[%s1 + $0x40] sm:$0xf]
        %v822 = vld [vmem:[%s1 + $0x44] sm:$0xf]
        %v823 = vld [vmem:[%s1 + $0x48] sm:$0xf]
        %v824 = vld [vmem:[%s1 + $0x4c] sm:$0xf]
        %v825 = vld [vmem:[%s1 + $0x50] sm:$0xf]
        %v826 = vld [vmem:[%s1 + $0x54] sm:$0xf]
        %v827 = vld [vmem:[%s1 + $0x58] sm:$0xf]
        %v828 = vld [vmem:[%s1 + $0x5c] sm:$0xf]
        %v829 = vld [vmem:[%s1 + $0x60] sm:$0xf]
        %v830 = vld [vmem:[%s1 + $0x64] sm:$0xf]
        %v831 = vld [vmem:[%s1 + $0x68] sm:$0xf]
        %v832 = vld [vmem:[%s1 + $0x6c] sm:$0xf]
        %v833 = vld [vmem:[%s1 + $0x70] sm:$0xf]
        %v834 = vld [vmem:[%s1 + $0x74] sm:$0xf]
        %v835 = vld [vmem:[%s1 + $0x78] sm:$0xf]
        %v836 = vld [vmem:[%s1 + $0x7c] sm:$0xf]
        %v837 = vunpack.c.l.bf16 %v805
        %v838 = vunpack.c.l.bf16 %v806
        %v839 = vunpack.c.l.bf16 %v807
        %v840 = vunpack.c.l.bf16 %v808
        %v841 = vunpack.c.l.bf16 %v809
        %v842 = vunpack.c.l.bf16 %v810
        %v843 = vunpack.c.l.bf16 %v811
        %v844 = vunpack.c.l.bf16 %v812
        %v845 = vunpack.c.l.bf16 %v813
        %v846 = vunpack.c.l.bf16 %v814
        %v847 = vunpack.c.l.bf16 %v815
        %v848 = vunpack.c.l.bf16 %v816
        %v849 = vunpack.c.l.bf16 %v817
        %v850 = vunpack.c.l.bf16 %v818
        %v851 = vunpack.c.l.bf16 %v819
        %v852 = vunpack.c.l.bf16 %v820
        %v853 = vunpack.c.l.bf16 %v821
        %v854 = vunpack.c.l.bf16 %v822
        %v855 = vunpack.c.l.bf16 %v823
        %v856 = vunpack.c.l.bf16 %v824
        %v857 = vunpack.c.l.bf16 %v825
        %v858 = vunpack.c.l.bf16 %v826
        %v859 = vunpack.c.l.bf16 %v827
        %v860 = vunpack.c.l.bf16 %v828
        %v861 = vunpack.c.l.bf16 %v829
        %v862 = vunpack.c.l.bf16 %v830
        %v863 = vunpack.c.l.bf16 %v831
        %v864 = vunpack.c.l.bf16 %v832
        %v865 = vunpack.c.l.bf16 %v833
        %v866 = vunpack.c.l.bf16 %v834
        %v867 = vunpack.c.l.bf16 %v835
        %v868 = vunpack.c.l.bf16 %v836
        %v885 = vunpack.c.l.b16 %v709
        %v886 = vunpack.c.l.b16 %v710
        %v887 = vunpack.c.l.b16 %v711
        %v888 = vunpack.c.l.b16 %v712
        %v889 = vunpack.c.l.b16 %v713
        %v890 = vunpack.c.l.b16 %v714
        %v891 = vunpack.c.l.b16 %v715
        %v892 = vunpack.c.l.b16 %v716
        %v893 = vunpack.c.l.b16 %v717
        %v894 = vunpack.c.l.b16 %v718
        %v895 = vunpack.c.l.b16 %v719
        %v896 = vunpack.c.l.b16 %v720
        %v897 = vunpack.c.l.b16 %v721
        %v898 = vunpack.c.l.b16 %v722
        %v899 = vunpack.c.l.b16 %v723
        %v900 = vunpack.c.l.b16 %v724
        %v901 = vpack.c.b16 %v886, %v885
        %v902 = vpack.c.b16 %v888, %v887
        %v903 = vpack.c.b16 %v890, %v889
        %v904 = vpack.c.b16 %v892, %v891
        %v905 = vpack.c.b16 %v894, %v893
        %v906 = vpack.c.b16 %v896, %v895
        %v907 = vpack.c.b16 %v898, %v897
        %v908 = vpack.c.b16 %v900, %v899
        %917 = vmatprep.subr.bf16.mxu0 0
        %918 = vmatpush1.bf16.msra.mxu0 %v901
        %919 = vmatprep.subr.bf16.mxu0 0
        %920 = vmatpush1.bf16.msra.mxu0 %v902
        %921 = vmatprep.subr.bf16.mxu0 0
        %922 = vmatpush1.bf16.msra.mxu0 %v903
        %923 = vmatprep.subr.bf16.mxu0 0
        %924 = vmatpush1.bf16.msra.mxu0 %v904
        %925 = vmatprep.subr.bf16.mxu0 0
        %926 = vmatpush1.bf16.msra.mxu0 %v905
        %927 = vmatprep.subr.bf16.mxu0 0
        %928 = vmatpush1.bf16.msra.mxu0 %v906
        %929 = vmatprep.subr.bf16.mxu0 0
        %930 = vmatpush1.bf16.msra.mxu0 %v907
        %931 = vmatprep.subr.bf16.mxu0 0
        %932 = vmatpush1.bf16.msra.mxu0 %v908
        %933 = vmatprep.subr.bf16.mxu0 0
        %934 = vmatpush1.bf16.msra.mxu0 0
        %935 = vmatprep.subr.bf16.mxu0 0
        %936 = vmatpush1.bf16.msra.mxu0 0
        %937 = vmatprep.subr.bf16.mxu0 0
        %938 = vmatpush1.bf16.msra.mxu0 0
        %939 = vmatprep.subr.bf16.mxu0 0
        %940 = vmatpush1.bf16.msra.mxu0 0
        %941 = vmatprep.subr.bf16.mxu0 0
        %942 = vmatpush1.bf16.msra.mxu0 0
        %943 = vmatprep.subr.bf16.mxu0 0
        %944 = vmatpush1.bf16.msra.mxu0 0
        %945 = vmatprep.subr.bf16.mxu0 0
        %946 = vmatpush1.bf16.msra.mxu0 0
        %947 = vmatprep.subr.bf16.mxu0 0
        %948 = vmatpush1.bf16.msra.mxu0 0
        %949 = vmatprep.mubr.bf16.mxu0 0
        %950 = vmatmul.mubr.bf16.gmra.mrb[0].mxu0 %v789
        %v951 = vpop.f32.mrb[0].mxu0
        %v952 = vadd.f32 %v837, %v951
        %v953 = vpop.f32.mrb[0].mxu0
        %v954 = vpop.f32.mrb[0].mxu0
        %v955 = vadd.f32 %v838, %v954
        %v956 = vpop.f32.mrb[0].mxu0
        %957 = vmatprep.mubr.bf16.mxu0 0
        %958 = vmatmul.mubr.bf16.gmra.mrb[0].mxu0 %v790
        %v959 = vpop.f32.mrb[0].mxu0
        %v960 = vadd.f32 %v839, %v959
        %v961 = vpop.f32.mrb[0].mxu0
        %v962 = vpop.f32.mrb[0].mxu0
        %v963 = vadd.f32 %v840, %v962
        %v964 = vpop.f32.mrb[0].mxu0
        %965 = vmatprep.mubr.bf16.mxu0 0
        %966 = vmatmul.mubr.bf16.gmra.mrb[0].mxu0 %v791
        %v967 = vpop.f32.mrb[0].mxu0
        %v968 = vadd.f32 %v841, %v967
        %v969 = vpop.f32.mrb[0].mxu0
        %v970 = vpop.f32.mrb[0].mxu0
        %v971 = vadd.f32 %v842, %v970
        %v972 = vpop.f32.mrb[0].mxu0
        %973 = vmatprep.mubr.bf16.mxu0 0
        %974 = vmatmul.mubr.bf16.gmra.mrb[0].mxu0 %v792
        %v975 = vpop.f32.mrb[0].mxu0
        %v976 = vadd.f32 %v843, %v975
        %v977 = vpop.f32.mrb[0].mxu0
        %v978 = vpop.f32.mrb[0].mxu0
        %v979 = vadd.f32 %v844, %v978
        %v980 = vpop.f32.mrb[0].mxu0
        %981 = vmatprep.mubr.bf16.mxu0 0
        %982 = vmatmul.mubr.bf16.gmra.mrb[0].mxu0 %v793
        %v983 = vpop.f32.mrb[0].mxu0
        %v984 = vadd.f32 %v845, %v983
        %v985 = vpop.f32.mrb[0].mxu0
        %v986 = vpop.f32.mrb[0].mxu0
        %v987 = vadd.f32 %v846, %v986
        %v988 = vpop.f32.mrb[0].mxu0
        %989 = vmatprep.mubr.bf16.mxu0 0
        %990 = vmatmul.mubr.bf16.gmra.mrb[0].mxu0 %v794
        %v991 = vpop.f32.mrb[0].mxu0
        %v992 = vadd.f32 %v847, %v991
        %v993 = vpop.f32.mrb[0].mxu0
        %v994 = vpop.f32.mrb[0].mxu0
        %v995 = vadd.f32 %v848, %v994
        %v996 = vpop.f32.mrb[0].mxu0
        %997 = vmatprep.mubr.bf16.mxu0 0
        %998 = vmatmul.mubr.bf16.gmra.mrb[0].mxu0 %v795
        %v999 = vpop.f32.mrb[0].mxu0
        %v1000 = vadd.f32 %v849, %v999
        %v1001 = vpop.f32.mrb[0].mxu0
        %v1002 = vpop.f32.mrb[0].mxu0
        %v1003 = vadd.f32 %v850, %v1002
        %v1004 = vpop.f32.mrb[0].mxu0
        %1005 = vmatprep.mubr.bf16.mxu0 0
        %1006 = vmatmul.mubr.bf16.gmra.mrb[0].mxu0 %v796
        %v1007 = vpop.f32.mrb[0].mxu0
        %v1008 = vadd.f32 %v851, %v1007
        %v1009 = vpop.f32.mrb[0].mxu0
        %v1010 = vpop.f32.mrb[0].mxu0
        %v1011 = vadd.f32 %v852, %v1010
        %v1012 = vpop.f32.mrb[0].mxu0
        %1013 = vmatprep.mubr.bf16.mxu0 0
        %1014 = vmatmul.mubr.bf16.gmra.mrb[0].mxu0 %v797
        %v1015 = vpop.f32.mrb[0].mxu0
        %v1016 = vadd.f32 %v853, %v1015
        %v1017 = vpop.f32.mrb[0].mxu0
        %v1018 = vpop.f32.mrb[0].mxu0
        %v1019 = vadd.f32 %v854, %v1018
        %v1020 = vpop.f32.mrb[0].mxu0
        %1021 = vmatprep.mubr.bf16.mxu0 0
        %1022 = vmatmul.mubr.bf16.gmra.mrb[0].mxu0 %v798
        %v1023 = vpop.f32.mrb[0].mxu0
        %v1024 = vadd.f32 %v855, %v1023
        %v1025 = vpop.f32.mrb[0].mxu0
        %v1026 = vpop.f32.mrb[0].mxu0
        %v1027 = vadd.f32 %v856, %v1026
        %v1028 = vpop.f32.mrb[0].mxu0
        %1029 = vmatprep.mubr.bf16.mxu0 0
        %1030 = vmatmul.mubr.bf16.gmra.mrb[0].mxu0 %v799
        %v1031 = vpop.f32.mrb[0].mxu0
        %v1032 = vadd.f32 %v857, %v1031
        %v1033 = vpop.f32.mrb[0].mxu0
        %v1034 = vpop.f32.mrb[0].mxu0
        %v1035 = vadd.f32 %v858, %v1034
        %v1036 = vpop.f32.mrb[0].mxu0
        %1037 = vmatprep.mubr.bf16.mxu0 0
        %1038 = vmatmul.mubr.bf16.gmra.mrb[0].mxu0 %v800
        %v1039 = vpop.f32.mrb[0].mxu0
        %v1040 = vadd.f32 %v859, %v1039
        %v1041 = vpop.f32.mrb[0].mxu0
        %v1042 = vpop.f32.mrb[0].mxu0
        %v1043 = vadd.f32 %v860, %v1042
        %v1044 = vpop.f32.mrb[0].mxu0
        %1045 = vmatprep.mubr.bf16.mxu0 0
        %1046 = vmatmul.mubr.bf16.gmra.mrb[0].mxu0 %v801
        %v1047 = vpop.f32.mrb[0].mxu0
        %v1048 = vadd.f32 %v861, %v1047
        %v1049 = vpop.f32.mrb[0].mxu0
        %v1050 = vpop.f32.mrb[0].mxu0
        %v1051 = vadd.f32 %v862, %v1050
        %v1052 = vpop.f32.mrb[0].mxu0
        %1053 = vmatprep.mubr.bf16.mxu0 0
        %1054 = vmatmul.mubr.bf16.gmra.mrb[0].mxu0 %v802
        %v1055 = vpop.f32.mrb[0].mxu0
        %v1056 = vadd.f32 %v863, %v1055
        %v1057 = vpop.f32.mrb[0].mxu0
        %v1058 = vpop.f32.mrb[0].mxu0
        %v1059 = vadd.f32 %v864, %v1058
        %v1060 = vpop.f32.mrb[0].mxu0
        %1061 = vmatprep.mubr.bf16.mxu0 0
        %1062 = vmatmul.mubr.bf16.gmra.mrb[0].mxu0 %v803
        %v1063 = vpop.f32.mrb[0].mxu0
        %v1064 = vadd.f32 %v865, %v1063
        %v1065 = vpop.f32.mrb[0].mxu0
        %v1066 = vpop.f32.mrb[0].mxu0
        %v1067 = vadd.f32 %v866, %v1066
        %v1068 = vpop.f32.mrb[0].mxu0
        %1069 = vmatprep.mubr.bf16.mxu0 0
        %1070 = vmatmul.mubr.bf16.gmra.mrb[0].mxu0 %v804
        %v1071 = vpop.f32.mrb[0].mxu0
        %v1072 = vadd.f32 %v867, %v1071
        %v1073 = vpop.f32.mrb[0].mxu0
        %v1074 = vpop.f32.mrb[0].mxu0
        %v1075 = vadd.f32 %v868, %v1074
        %v1076 = vpop.f32.mrb[0].mxu0
        %1077 = vdwg.mxu0
        %1078 = vadd.xlane.f32.xlu0 %v952
        %v1079 = vpop.xlane.xlu0 %1078
        %1080 = vadd.xlane.f32.xlu0 %v955
        %v1081 = vpop.xlane.xlu0 %1080
        %1082 = vadd.xlane.f32.xlu0 %v960
        %v1083 = vpop.xlane.xlu0 %1082
        %1084 = vadd.xlane.f32.xlu0 %v963
        %v1085 = vpop.xlane.xlu0 %1084
        %1086 = vadd.xlane.f32.xlu0 %v968
        %v1087 = vpop.xlane.xlu0 %1086
        %1088 = vadd.xlane.f32.xlu0 %v971
        %v1089 = vpop.xlane.xlu0 %1088
        %1090 = vadd.xlane.f32.xlu0 %v976
        %v1091 = vpop.xlane.xlu0 %1090
        %1092 = vadd.xlane.f32.xlu0 %v979
        %v1093 = vpop.xlane.xlu0 %1092
        %1094 = vadd.xlane.f32.xlu0 %v984
        %v1095 = vpop.xlane.xlu0 %1094
        %1096 = vadd.xlane.f32.xlu0 %v987
        %v1097 = vpop.xlane.xlu0 %1096
        %1098 = vadd.xlane.f32.xlu0 %v992
        %v1099 = vpop.xlane.xlu0 %1098
        %1100 = vadd.xlane.f32.xlu0 %v995
        %v1101 = vpop.xlane.xlu0 %1100
        %1102 = vadd.xlane.f32.xlu0 %v1000
        %v1103 = vpop.xlane.xlu0 %1102
        %1104 = vadd.xlane.f32.xlu0 %v1003
        %v1105 = vpop.xlane.xlu0 %1104
        %1106 = vadd.xlane.f32.xlu0 %v1008
        %v1107 = vpop.xlane.xlu0 %1106
        %1108 = vadd.xlane.f32.xlu0 %v1011
        %v1109 = vpop.xlane.xlu0 %1108
        %1110 = vadd.xlane.f32.xlu0 %v1016
        %v1111 = vpop.xlane.xlu0 %1110
        %1112 = vadd.xlane.f32.xlu0 %v1019
        %v1113 = vpop.xlane.xlu0 %1112
        %1114 = vadd.xlane.f32.xlu0 %v1024
        %v1115 = vpop.xlane.xlu0 %1114
        %1116 = vadd.xlane.f32.xlu0 %v1027
        %v1117 = vpop.xlane.xlu0 %1116
        %1118 = vadd.xlane.f32.xlu0 %v1032
        %v1119 = vpop.xlane.xlu0 %1118
        %1120 = vadd.xlane.f32.xlu0 %v1035
        %v1121 = vpop.xlane.xlu0 %1120
        %1122 = vadd.xlane.f32.xlu0 %v1040
        %v1123 = vpop.xlane.xlu0 %1122
        %1124 = vadd.xlane.f32.xlu0 %v1043
        %v1125 = vpop.xlane.xlu0 %1124
        %1126 = vadd.xlane.f32.xlu0 %v1048
        %v1127 = vpop.xlane.xlu0 %1126
        %1128 = vadd.xlane.f32.xlu0 %v1051
        %v1129 = vpop.xlane.xlu0 %1128
        %1130 = vadd.xlane.f32.xlu0 %v1056
        %v1131 = vpop.xlane.xlu0 %1130
        %1132 = vadd.xlane.f32.xlu0 %v1059
        %v1133 = vpop.xlane.xlu0 %1132
        %1134 = vadd.xlane.f32.xlu0 %v1064
        %v1135 = vpop.xlane.xlu0 %1134
        %1136 = vadd.xlane.f32.xlu0 %v1067
        %v1137 = vpop.xlane.xlu0 %1136
        %1138 = vadd.xlane.f32.xlu0 %v1072
        %v1139 = vpop.xlane.xlu0 %1138
        %1140 = vadd.xlane.f32.xlu0 %v1075
        %v1141 = vpop.xlane.xlu0 %1140
        %v1142 = vrcp.pop 128.0
        %v1143 = vmul.f32 %v1079, %v1142
        %v1144 = vmul.f32 %v1081, %v1142
        %v1145 = vmul.f32 %v1083, %v1142
        %v1146 = vmul.f32 %v1085, %v1142
        %v1147 = vmul.f32 %v1087, %v1142
        %v1148 = vmul.f32 %v1089, %v1142
        %v1149 = vmul.f32 %v1091, %v1142
        %v1150 = vmul.f32 %v1093, %v1142
        %v1151 = vmul.f32 %v1095, %v1142
        %v1152 = vmul.f32 %v1097, %v1142
        %v1153 = vmul.f32 %v1099, %v1142
        %v1154 = vmul.f32 %v1101, %v1142
        %v1155 = vmul.f32 %v1103, %v1142
        %v1156 = vmul.f32 %v1105, %v1142
        %v1157 = vmul.f32 %v1107, %v1142
        %v1158 = vmul.f32 %v1109, %v1142
        %v1159 = vmul.f32 %v1111, %v1142
        %v1160 = vmul.f32 %v1113, %v1142
        %v1161 = vmul.f32 %v1115, %v1142
        %v1162 = vmul.f32 %v1117, %v1142
        %v1163 = vmul.f32 %v1119, %v1142
        %v1164 = vmul.f32 %v1121, %v1142
        %v1165 = vmul.f32 %v1123, %v1142
        %v1166 = vmul.f32 %v1125, %v1142
        %v1167 = vmul.f32 %v1127, %v1142
        %v1168 = vmul.f32 %v1129, %v1142
        %v1169 = vmul.f32 %v1131, %v1142
        %v1170 = vmul.f32 %v1133, %v1142
        %v1171 = vmul.f32 %v1135, %v1142
        %v1172 = vmul.f32 %v1137, %v1142
        %v1173 = vmul.f32 %v1139, %v1142
        %v1174 = vmul.f32 %v1141, %v1142
        %v1175 = vsub.f32 %v952, %v1143
        %v1176 = vsub.f32 %v955, %v1144
        %v1177 = vsub.f32 %v960, %v1145
        %v1178 = vsub.f32 %v963, %v1146
        %v1179 = vsub.f32 %v968, %v1147
        %v1180 = vsub.f32 %v971, %v1148
        %v1181 = vsub.f32 %v976, %v1149
        %v1182 = vsub.f32 %v979, %v1150
        %v1183 = vsub.f32 %v984, %v1151
        %v1184 = vsub.f32 %v987, %v1152
        %v1185 = vsub.f32 %v992, %v1153
        %v1186 = vsub.f32 %v995, %v1154
        %v1187 = vsub.f32 %v1000, %v1155
        %v1188 = vsub.f32 %v1003, %v1156
        %v1189 = vsub.f32 %v1008, %v1157
        %v1190 = vsub.f32 %v1011, %v1158
        %v1191 = vsub.f32 %v1016, %v1159
        %v1192 = vsub.f32 %v1019, %v1160
        %v1193 = vsub.f32 %v1024, %v1161
        %v1194 = vsub.f32 %v1027, %v1162
        %v1195 = vsub.f32 %v1032, %v1163
        %v1196 = vsub.f32 %v1035, %v1164
        %v1197 = vsub.f32 %v1040, %v1165
        %v1198 = vsub.f32 %v1043, %v1166
        %v1199 = vsub.f32 %v1048, %v1167
        %v1200 = vsub.f32 %v1051, %v1168
        %v1201 = vsub.f32 %v1056, %v1169
        %v1202 = vsub.f32 %v1059, %v1170
        %v1203 = vsub.f32 %v1064, %v1171
        %v1204 = vsub.f32 %v1067, %v1172
        %v1205 = vsub.f32 %v1072, %v1173
        %v1206 = vsub.f32 %v1075, %v1174
        %v1207 = vmul.f32 %v1175, %v1175
        %v1208 = vmul.f32 %v1176, %v1176
        %v1209 = vmul.f32 %v1177, %v1177
        %v1210 = vmul.f32 %v1178, %v1178
        %v1211 = vmul.f32 %v1179, %v1179
        %v1212 = vmul.f32 %v1180, %v1180
        %v1213 = vmul.f32 %v1181, %v1181
        %v1214 = vmul.f32 %v1182, %v1182
        %v1215 = vmul.f32 %v1183, %v1183
        %v1216 = vmul.f32 %v1184, %v1184
        %v1217 = vmul.f32 %v1185, %v1185
        %v1218 = vmul.f32 %v1186, %v1186
        %v1219 = vmul.f32 %v1187, %v1187
        %v1220 = vmul.f32 %v1188, %v1188
        %v1221 = vmul.f32 %v1189, %v1189
        %v1222 = vmul.f32 %v1190, %v1190
        %v1223 = vmul.f32 %v1191, %v1191
        %v1224 = vmul.f32 %v1192, %v1192
        %v1225 = vmul.f32 %v1193, %v1193
        %v1226 = vmul.f32 %v1194, %v1194
        %v1227 = vmul.f32 %v1195, %v1195
        %v1228 = vmul.f32 %v1196, %v1196
        %v1229 = vmul.f32 %v1197, %v1197
        %v1230 = vmul.f32 %v1198, %v1198
        %v1231 = vmul.f32 %v1199, %v1199
        %v1232 = vmul.f32 %v1200, %v1200
        %v1233 = vmul.f32 %v1201, %v1201
        %v1234 = vmul.f32 %v1202, %v1202
        %v1235 = vmul.f32 %v1203, %v1203
        %v1236 = vmul.f32 %v1204, %v1204
        %v1237 = vmul.f32 %v1205, %v1205
        %v1238 = vmul.f32 %v1206, %v1206
        %1239 = vadd.xlane.f32.xlu0 %v1207
        %v1240 = vpop.xlane.xlu0 %1239
        %1241 = vadd.xlane.f32.xlu0 %v1208
        %v1242 = vpop.xlane.xlu0 %1241
        %1243 = vadd.xlane.f32.xlu0 %v1209
        %v1244 = vpop.xlane.xlu0 %1243
        %1245 = vadd.xlane.f32.xlu0 %v1210
        %v1246 = vpop.xlane.xlu0 %1245
        %1247 = vadd.xlane.f32.xlu0 %v1211
        %v1248 = vpop.xlane.xlu0 %1247
        %1249 = vadd.xlane.f32.xlu0 %v1212
        %v1250 = vpop.xlane.xlu0 %1249
        %1251 = vadd.xlane.f32.xlu0 %v1213
        %v1252 = vpop.xlane.xlu0 %1251
        %1253 = vadd.xlane.f32.xlu0 %v1214
        %v1254 = vpop.xlane.xlu0 %1253
        %1255 = vadd.xlane.f32.xlu0 %v1215
        %v1256 = vpop.xlane.xlu0 %1255
        %1257 = vadd.xlane.f32.xlu0 %v1216
        %v1258 = vpop.xlane.xlu0 %1257
        %1259 = vadd.xlane.f32.xlu0 %v1217
        %v1260 = vpop.xlane.xlu0 %1259
        %1261 = vadd.xlane.f32.xlu0 %v1218
        %v1262 = vpop.xlane.xlu0 %1261
        %1263 = vadd.xlane.f32.xlu0 %v1219
        %v1264 = vpop.xlane.xlu0 %1263
        %1265 = vadd.xlane.f32.xlu0 %v1220
        %v1266 = vpop.xlane.xlu0 %1265
        %1267 = vadd.xlane.f32.xlu0 %v1221
        %v1268 = vpop.xlane.xlu0 %1267
        %1269 = vadd.xlane.f32.xlu0 %v1222
        %v1270 = vpop.xlane.xlu0 %1269
        %1271 = vadd.xlane.f32.xlu0 %v1223
        %v1272 = vpop.xlane.xlu0 %1271
        %1273 = vadd.xlane.f32.xlu0 %v1224
        %v1274 = vpop.xlane.xlu0 %1273
        %1275 = vadd.xlane.f32.xlu0 %v1225
        %v1276 = vpop.xlane.xlu0 %1275
        %1277 = vadd.xlane.f32.xlu0 %v1226
        %v1278 = vpop.xlane.xlu0 %1277
        %1279 = vadd.xlane.f32.xlu0 %v1227
        %v1280 = vpop.xlane.xlu0 %1279
        %1281 = vadd.xlane.f32.xlu0 %v1228
        %v1282 = vpop.xlane.xlu0 %1281
        %1283 = vadd.xlane.f32.xlu0 %v1229
        %v1284 = vpop.xlane.xlu0 %1283
        %1285 = vadd.xlane.f32.xlu0 %v1230
        %v1286 = vpop.xlane.xlu0 %1285
        %1287 = vadd.xlane.f32.xlu0 %v1231
        %v1288 = vpop.xlane.xlu0 %1287
        %1289 = vadd.xlane.f32.xlu0 %v1232
        %v1290 = vpop.xlane.xlu0 %1289
        %1291 = vadd.xlane.f32.xlu0 %v1233
        %v1292 = vpop.xlane.xlu0 %1291
        %1293 = vadd.xlane.f32.xlu0 %v1234
        %v1294 = vpop.xlane.xlu0 %1293
        %1295 = vadd.xlane.f32.xlu0 %v1235
        %v1296 = vpop.xlane.xlu0 %1295
        %1297 = vadd.xlane.f32.xlu0 %v1236
        %v1298 = vpop.xlane.xlu0 %1297
        %1299 = vadd.xlane.f32.xlu0 %v1237
        %v1300 = vpop.xlane.xlu0 %1299
        %1301 = vadd.xlane.f32.xlu0 %v1238
        %v1302 = vpop.xlane.xlu0 %1301
        %v1303 = vrcp.pop 127.0
        %v1304 = vmul.f32 %v1240, %v1303
        %v1305 = vmul.f32 %v1242, %v1303
        %v1306 = vmul.f32 %v1244, %v1303
        %v1307 = vmul.f32 %v1246, %v1303
        %v1308 = vmul.f32 %v1248, %v1303
        %v1309 = vmul.f32 %v1250, %v1303
        %v1310 = vmul.f32 %v1252, %v1303
        %v1311 = vmul.f32 %v1254, %v1303
        %v1312 = vmul.f32 %v1256, %v1303
        %v1313 = vmul.f32 %v1258, %v1303
        %v1314 = vmul.f32 %v1260, %v1303
        %v1315 = vmul.f32 %v1262, %v1303
        %v1316 = vmul.f32 %v1264, %v1303
        %v1317 = vmul.f32 %v1266, %v1303
        %v1318 = vmul.f32 %v1268, %v1303
        %v1319 = vmul.f32 %v1270, %v1303
        %v1320 = vmul.f32 %v1272, %v1303
        %v1321 = vmul.f32 %v1274, %v1303
        %v1322 = vmul.f32 %v1276, %v1303
        %v1323 = vmul.f32 %v1278, %v1303
        %v1324 = vmul.f32 %v1280, %v1303
        %v1325 = vmul.f32 %v1282, %v1303
        %v1326 = vmul.f32 %v1284, %v1303
        %v1327 = vmul.f32 %v1286, %v1303
        %v1328 = vmul.f32 %v1288, %v1303
        %v1329 = vmul.f32 %v1290, %v1303
        %v1330 = vmul.f32 %v1292, %v1303
        %v1331 = vmul.f32 %v1294, %v1303
        %v1332 = vmul.f32 %v1296, %v1303
        %v1333 = vmul.f32 %v1298, %v1303
        %v1334 = vmul.f32 %v1300, %v1303
        %v1335 = vmul.f32 %v1302, %v1303
        %v1336 = vld [vmem:[%s3] sm:$0x1]
        %v1337 = vrsqrt.pop %v1304
        %v1338 = vmul.f32 %v1304, %v1337
        %vm1339 = vcmp.eq.f32.partialorder %v1304, inf
        %v1340 = vsel %vm1339, %v1304, %v1338
        %vm1341 = vcmp.eq.f32.partialorder %v1304, 0.0
        %v1342 = vand.u32 %v1304, 2147483648
        %v1343 = vsel %vm1341, %v1342, %v1340
        %v1344 = vrsqrt.pop %v1305
        %v1345 = vmul.f32 %v1305, %v1344
        %vm1346 = vcmp.eq.f32.partialorder %v1305, inf
        %v1347 = vsel %vm1346, %v1305, %v1345
        %vm1348 = vcmp.eq.f32.partialorder %v1305, 0.0
        %v1349 = vand.u32 %v1305, 2147483648
        %v1350 = vsel %vm1348, %v1349, %v1347
        %v1351 = vrsqrt.pop %v1306
        %v1352 = vmul.f32 %v1306, %v1351
        %vm1353 = vcmp.eq.f32.partialorder %v1306, inf
        %v1354 = vsel %vm1353, %v1306, %v1352
        %vm1355 = vcmp.eq.f32.partialorder %v1306, 0.0
        %v1356 = vand.u32 %v1306, 2147483648
        %v1357 = vsel %vm1355, %v1356, %v1354
        %v1358 = vrsqrt.pop %v1307
        %v1359 = vmul.f32 %v1307, %v1358
        %vm1360 = vcmp.eq.f32.partialorder %v1307, inf
        %v1361 = vsel %vm1360, %v1307, %v1359
        %vm1362 = vcmp.eq.f32.partialorder %v1307, 0.0
        %v1363 = vand.u32 %v1307, 2147483648
        %v1364 = vsel %vm1362, %v1363, %v1361
        %v1365 = vrsqrt.pop %v1308
        %v1366 = vmul.f32 %v1308, %v1365
        %vm1367 = vcmp.eq.f32.partialorder %v1308, inf
        %v1368 = vsel %vm1367, %v1308, %v1366
        %vm1369 = vcmp.eq.f32.partialorder %v1308, 0.0
        %v1370 = vand.u32 %v1308, 2147483648
        %v1371 = vsel %vm1369, %v1370, %v1368
        %v1372 = vrsqrt.pop %v1309
        %v1373 = vmul.f32 %v1309, %v1372
        %vm1374 = vcmp.eq.f32.partialorder %v1309, inf
        %v1375 = vsel %vm1374, %v1309, %v1373
        %vm1376 = vcmp.eq.f32.partialorder %v1309, 0.0
        %v1377 = vand.u32 %v1309, 2147483648
        %v1378 = vsel %vm1376, %v1377, %v1375
        %v1379 = vrsqrt.pop %v1310
        %v1380 = vmul.f32 %v1310, %v1379
        %vm1381 = vcmp.eq.f32.partialorder %v1310, inf
        %v1382 = vsel %vm1381, %v1310, %v1380
        %vm1383 = vcmp.eq.f32.partialorder %v1310, 0.0
        %v1384 = vand.u32 %v1310, 2147483648
        %v1385 = vsel %vm1383, %v1384, %v1382
        %v1386 = vrsqrt.pop %v1311
        %v1387 = vmul.f32 %v1311, %v1386
        %vm1388 = vcmp.eq.f32.partialorder %v1311, inf
        %v1389 = vsel %vm1388, %v1311, %v1387
        %vm1390 = vcmp.eq.f32.partialorder %v1311, 0.0
        %v1391 = vand.u32 %v1311, 2147483648
        %v1392 = vsel %vm1390, %v1391, %v1389
        %v1393 = vrsqrt.pop %v1312
        %v1394 = vmul.f32 %v1312, %v1393
        %vm1395 = vcmp.eq.f32.partialorder %v1312, inf
        %v1396 = vsel %vm1395, %v1312, %v1394
        %vm1397 = vcmp.eq.f32.partialorder %v1312, 0.0
        %v1398 = vand.u32 %v1312, 2147483648
        %v1399 = vsel %vm1397, %v1398, %v1396
        %v1400 = vrsqrt.pop %v1313
        %v1401 = vmul.f32 %v1313, %v1400
        %vm1402 = vcmp.eq.f32.partialorder %v1313, inf
        %v1403 = vsel %vm1402, %v1313, %v1401
        %vm1404 = vcmp.eq.f32.partialorder %v1313, 0.0
        %v1405 = vand.u32 %v1313, 2147483648
        %v1406 = vsel %vm1404, %v1405, %v1403
        %v1407 = vrsqrt.pop %v1314
        %v1408 = vmul.f32 %v1314, %v1407
        %vm1409 = vcmp.eq.f32.partialorder %v1314, inf
        %v1410 = vsel %vm1409, %v1314, %v1408
        %vm1411 = vcmp.eq.f32.partialorder %v1314, 0.0
        %v1412 = vand.u32 %v1314, 2147483648
        %v1413 = vsel %vm1411, %v1412, %v1410
        %v1414 = vrsqrt.pop %v1315
        %v1415 = vmul.f32 %v1315, %v1414
        %vm1416 = vcmp.eq.f32.partialorder %v1315, inf
        %v1417 = vsel %vm1416, %v1315, %v1415
        %vm1418 = vcmp.eq.f32.partialorder %v1315, 0.0
        %v1419 = vand.u32 %v1315, 2147483648
        %v1420 = vsel %vm1418, %v1419, %v1417
        %v1421 = vrsqrt.pop %v1316
        %v1422 = vmul.f32 %v1316, %v1421
        %vm1423 = vcmp.eq.f32.partialorder %v1316, inf
        %v1424 = vsel %vm1423, %v1316, %v1422
        %vm1425 = vcmp.eq.f32.partialorder %v1316, 0.0
        %v1426 = vand.u32 %v1316, 2147483648
        %v1427 = vsel %vm1425, %v1426, %v1424
        %v1428 = vrsqrt.pop %v1317
        %v1429 = vmul.f32 %v1317, %v1428
        %vm1430 = vcmp.eq.f32.partialorder %v1317, inf
        %v1431 = vsel %vm1430, %v1317, %v1429
        %vm1432 = vcmp.eq.f32.partialorder %v1317, 0.0
        %v1433 = vand.u32 %v1317, 2147483648
        %v1434 = vsel %vm1432, %v1433, %v1431
        %v1435 = vrsqrt.pop %v1318
        %v1436 = vmul.f32 %v1318, %v1435
        %vm1437 = vcmp.eq.f32.partialorder %v1318, inf
        %v1438 = vsel %vm1437, %v1318, %v1436
        %vm1439 = vcmp.eq.f32.partialorder %v1318, 0.0
        %v1440 = vand.u32 %v1318, 2147483648
        %v1441 = vsel %vm1439, %v1440, %v1438
        %v1442 = vrsqrt.pop %v1319
        %v1443 = vmul.f32 %v1319, %v1442
        %vm1444 = vcmp.eq.f32.partialorder %v1319, inf
        %v1445 = vsel %vm1444, %v1319, %v1443
        %vm1446 = vcmp.eq.f32.partialorder %v1319, 0.0
        %v1447 = vand.u32 %v1319, 2147483648
        %v1448 = vsel %vm1446, %v1447, %v1445
        %v1449 = vrsqrt.pop %v1320
        %v1450 = vmul.f32 %v1320, %v1449
        %vm1451 = vcmp.eq.f32.partialorder %v1320, inf
        %v1452 = vsel %vm1451, %v1320, %v1450
        %vm1453 = vcmp.eq.f32.partialorder %v1320, 0.0
        %v1454 = vand.u32 %v1320, 2147483648
        %v1455 = vsel %vm1453, %v1454, %v1452
        %v1456 = vrsqrt.pop %v1321
        %v1457 = vmul.f32 %v1321, %v1456
        %vm1458 = vcmp.eq.f32.partialorder %v1321, inf
        %v1459 = vsel %vm1458, %v1321, %v1457
        %vm1460 = vcmp.eq.f32.partialorder %v1321, 0.0
        %v1461 = vand.u32 %v1321, 2147483648
        %v1462 = vsel %vm1460, %v1461, %v1459
        %v1463 = vrsqrt.pop %v1322
        %v1464 = vmul.f32 %v1322, %v1463
        %vm1465 = vcmp.eq.f32.partialorder %v1322, inf
        %v1466 = vsel %vm1465, %v1322, %v1464
        %vm1467 = vcmp.eq.f32.partialorder %v1322, 0.0
        %v1468 = vand.u32 %v1322, 2147483648
        %v1469 = vsel %vm1467, %v1468, %v1466
        %v1470 = vrsqrt.pop %v1323
        %v1471 = vmul.f32 %v1323, %v1470
        %vm1472 = vcmp.eq.f32.partialorder %v1323, inf
        %v1473 = vsel %vm1472, %v1323, %v1471
        %vm1474 = vcmp.eq.f32.partialorder %v1323, 0.0
        %v1475 = vand.u32 %v1323, 2147483648
        %v1476 = vsel %vm1474, %v1475, %v1473
        %v1477 = vrsqrt.pop %v1324
        %v1478 = vmul.f32 %v1324, %v1477
        %vm1479 = vcmp.eq.f32.partialorder %v1324, inf
        %v1480 = vsel %vm1479, %v1324, %v1478
        %vm1481 = vcmp.eq.f32.partialorder %v1324, 0.0
        %v1482 = vand.u32 %v1324, 2147483648
        %v1483 = vsel %vm1481, %v1482, %v1480
        %v1484 = vrsqrt.pop %v1325
        %v1485 = vmul.f32 %v1325, %v1484
        %vm1486 = vcmp.eq.f32.partialorder %v1325, inf
        %v1487 = vsel %vm1486, %v1325, %v1485
        %vm1488 = vcmp.eq.f32.partialorder %v1325, 0.0
        %v1489 = vand.u32 %v1325, 2147483648
        %v1490 = vsel %vm1488, %v1489, %v1487
        %v1491 = vrsqrt.pop %v1326
        %v1492 = vmul.f32 %v1326, %v1491
        %vm1493 = vcmp.eq.f32.partialorder %v1326, inf
        %v1494 = vsel %vm1493, %v1326, %v1492
        %vm1495 = vcmp.eq.f32.partialorder %v1326, 0.0
        %v1496 = vand.u32 %v1326, 2147483648
        %v1497 = vsel %vm1495, %v1496, %v1494
        %v1498 = vrsqrt.pop %v1327
        %v1499 = vmul.f32 %v1327, %v1498
        %vm1500 = vcmp.eq.f32.partialorder %v1327, inf
        %v1501 = vsel %vm1500, %v1327, %v1499
        %vm1502 = vcmp.eq.f32.partialorder %v1327, 0.0
        %v1503 = vand.u32 %v1327, 2147483648
        %v1504 = vsel %vm1502, %v1503, %v1501
        %v1505 = vrsqrt.pop %v1328
        %v1506 = vmul.f32 %v1328, %v1505
        %vm1507 = vcmp.eq.f32.partialorder %v1328, inf
        %v1508 = vsel %vm1507, %v1328, %v1506
        %vm1509 = vcmp.eq.f32.partialorder %v1328, 0.0
        %v1510 = vand.u32 %v1328, 2147483648
        %v1511 = vsel %vm1509, %v1510, %v1508
        %v1512 = vrsqrt.pop %v1329
        %v1513 = vmul.f32 %v1329, %v1512
        %vm1514 = vcmp.eq.f32.partialorder %v1329, inf
        %v1515 = vsel %vm1514, %v1329, %v1513
        %vm1516 = vcmp.eq.f32.partialorder %v1329, 0.0
        %v1517 = vand.u32 %v1329, 2147483648
        %v1518 = vsel %vm1516, %v1517, %v1515
        %v1519 = vrsqrt.pop %v1330
        %v1520 = vmul.f32 %v1330, %v1519
        %vm1521 = vcmp.eq.f32.partialorder %v1330, inf
        %v1522 = vsel %vm1521, %v1330, %v1520
        %vm1523 = vcmp.eq.f32.partialorder %v1330, 0.0
        %v1524 = vand.u32 %v1330, 2147483648
        %v1525 = vsel %vm1523, %v1524, %v1522
        %v1526 = vrsqrt.pop %v1331
        %v1527 = vmul.f32 %v1331, %v1526
        %vm1528 = vcmp.eq.f32.partialorder %v1331, inf
        %v1529 = vsel %vm1528, %v1331, %v1527
        %vm1530 = vcmp.eq.f32.partialorder %v1331, 0.0
        %v1531 = vand.u32 %v1331, 2147483648
        %v1532 = vsel %vm1530, %v1531, %v1529
        %v1533 = vrsqrt.pop %v1332
        %v1534 = vmul.f32 %v1332, %v1533
        %vm1535 = vcmp.eq.f32.partialorder %v1332, inf
        %v1536 = vsel %vm1535, %v1332, %v1534
        %vm1537 = vcmp.eq.f32.partialorder %v1332, 0.0
        %v1538 = vand.u32 %v1332, 2147483648
        %v1539 = vsel %vm1537, %v1538, %v1536
        %v1540 = vrsqrt.pop %v1333
        %v1541 = vmul.f32 %v1333, %v1540
        %vm1542 = vcmp.eq.f32.partialorder %v1333, inf
        %v1543 = vsel %vm1542, %v1333, %v1541
        %vm1544 = vcmp.eq.f32.partialorder %v1333, 0.0
        %v1545 = vand.u32 %v1333, 2147483648
        %v1546 = vsel %vm1544, %v1545, %v1543
        %v1547 = vrsqrt.pop %v1334
        %v1548 = vmul.f32 %v1334, %v1547
        %vm1549 = vcmp.eq.f32.partialorder %v1334, inf
        %v1550 = vsel %vm1549, %v1334, %v1548
        %vm1551 = vcmp.eq.f32.partialorder %v1334, 0.0
        %v1552 = vand.u32 %v1334, 2147483648
        %v1553 = vsel %vm1551, %v1552, %v1550
        %v1554 = vrsqrt.pop %v1335
        %v1555 = vmul.f32 %v1335, %v1554
        %vm1556 = vcmp.eq.f32.partialorder %v1335, inf
        %v1557 = vsel %vm1556, %v1335, %v1555
        %vm1558 = vcmp.eq.f32.partialorder %v1335, 0.0
        %v1559 = vand.u32 %v1335, 2147483648
        %v1560 = vsel %vm1558, %v1559, %v1557
        %v1561 = vadd.f32 %v1343, 1e-06
        %v1562 = vadd.f32 %v1350, 1e-06
        %v1563 = vadd.f32 %v1357, 1e-06
        %v1564 = vadd.f32 %v1364, 1e-06
        %v1565 = vadd.f32 %v1371, 1e-06
        %v1566 = vadd.f32 %v1378, 1e-06
        %v1567 = vadd.f32 %v1385, 1e-06
        %v1568 = vadd.f32 %v1392, 1e-06
        %v1569 = vadd.f32 %v1399, 1e-06
        %v1570 = vadd.f32 %v1406, 1e-06
        %v1571 = vadd.f32 %v1413, 1e-06
        %v1572 = vadd.f32 %v1420, 1e-06
        %v1573 = vadd.f32 %v1427, 1e-06
        %v1574 = vadd.f32 %v1434, 1e-06
        %v1575 = vadd.f32 %v1441, 1e-06
        %v1576 = vadd.f32 %v1448, 1e-06
        %v1577 = vadd.f32 %v1455, 1e-06
        %v1578 = vadd.f32 %v1462, 1e-06
        %v1579 = vadd.f32 %v1469, 1e-06
        %v1580 = vadd.f32 %v1476, 1e-06
        %v1581 = vadd.f32 %v1483, 1e-06
        %v1582 = vadd.f32 %v1490, 1e-06
        %v1583 = vadd.f32 %v1497, 1e-06
        %v1584 = vadd.f32 %v1504, 1e-06
        %v1585 = vadd.f32 %v1511, 1e-06
        %v1586 = vadd.f32 %v1518, 1e-06
        %v1587 = vadd.f32 %v1525, 1e-06
        %v1588 = vadd.f32 %v1532, 1e-06
        %v1589 = vadd.f32 %v1539, 1e-06
        %v1590 = vadd.f32 %v1546, 1e-06
        %v1591 = vadd.f32 %v1553, 1e-06
        %v1592 = vadd.f32 %v1560, 1e-06
        %v1593 = vrcp.pop %v1561
        %v1594 = vmul.f32 %v1175, %v1593
        %v1595 = vrcp.pop %v1562
        %v1596 = vmul.f32 %v1176, %v1595
        %v1597 = vrcp.pop %v1563
        %v1598 = vmul.f32 %v1177, %v1597
        %v1599 = vrcp.pop %v1564
        %v1600 = vmul.f32 %v1178, %v1599
        %v1601 = vrcp.pop %v1565
        %v1602 = vmul.f32 %v1179, %v1601
        %v1603 = vrcp.pop %v1566
        %v1604 = vmul.f32 %v1180, %v1603
        %v1605 = vrcp.pop %v1567
        %v1606 = vmul.f32 %v1181, %v1605
        %v1607 = vrcp.pop %v1568
        %v1608 = vmul.f32 %v1182, %v1607
        %v1609 = vrcp.pop %v1569
        %v1610 = vmul.f32 %v1183, %v1609
        %v1611 = vrcp.pop %v1570
        %v1612 = vmul.f32 %v1184, %v1611
        %v1613 = vrcp.pop %v1571
        %v1614 = vmul.f32 %v1185, %v1613
        %v1615 = vrcp.pop %v1572
        %v1616 = vmul.f32 %v1186, %v1615
        %v1617 = vrcp.pop %v1573
        %v1618 = vmul.f32 %v1187, %v1617
        %v1619 = vrcp.pop %v1574
        %v1620 = vmul.f32 %v1188, %v1619
        %v1621 = vrcp.pop %v1575
        %v1622 = vmul.f32 %v1189, %v1621
        %v1623 = vrcp.pop %v1576
        %v1624 = vmul.f32 %v1190, %v1623
        %v1625 = vrcp.pop %v1577
        %v1626 = vmul.f32 %v1191, %v1625
        %v1627 = vrcp.pop %v1578
        %v1628 = vmul.f32 %v1192, %v1627
        %v1629 = vrcp.pop %v1579
        %v1630 = vmul.f32 %v1193, %v1629
        %v1631 = vrcp.pop %v1580
        %v1632 = vmul.f32 %v1194, %v1631
        %v1633 = vrcp.pop %v1581
        %v1634 = vmul.f32 %v1195, %v1633
        %v1635 = vrcp.pop %v1582
        %v1636 = vmul.f32 %v1196, %v1635
        %v1637 = vrcp.pop %v1583
        %v1638 = vmul.f32 %v1197, %v1637
        %v1639 = vrcp.pop %v1584
        %v1640 = vmul.f32 %v1198, %v1639
        %v1641 = vrcp.pop %v1585
        %v1642 = vmul.f32 %v1199, %v1641
        %v1643 = vrcp.pop %v1586
        %v1644 = vmul.f32 %v1200, %v1643
        %v1645 = vrcp.pop %v1587
        %v1646 = vmul.f32 %v1201, %v1645
        %v1647 = vrcp.pop %v1588
        %v1648 = vmul.f32 %v1202, %v1647
        %v1649 = vrcp.pop %v1589
        %v1650 = vmul.f32 %v1203, %v1649
        %v1651 = vrcp.pop %v1590
        %v1652 = vmul.f32 %v1204, %v1651
        %v1653 = vrcp.pop %v1591
        %v1654 = vmul.f32 %v1205, %v1653
        %v1655 = vrcp.pop %v1592
        %v1656 = vmul.f32 %v1206, %v1655
        %v1658 = vlaneseq
        %v1659 = vshrl.u32 %v1658, 7
        %v1660 = vsub.s32 0, %v1659
        %v1661 = vrot.slane %v1336, %v1660
        %v1663 = vmul.f32 %v1661, %v1594
        %v1664 = vmul.f32 %v1661, %v1596
        %v1665 = vmul.f32 %v1661, %v1598
        %v1666 = vmul.f32 %v1661, %v1600
        %v1667 = vmul.f32 %v1661, %v1602
        %v1668 = vmul.f32 %v1661, %v1604
        %v1669 = vmul.f32 %v1661, %v1606
        %v1670 = vmul.f32 %v1661, %v1608
        %v1671 = vmul.f32 %v1661, %v1610
        %v1672 = vmul.f32 %v1661, %v1612
        %v1673 = vmul.f32 %v1661, %v1614
        %v1674 = vmul.f32 %v1661, %v1616
        %v1675 = vmul.f32 %v1661, %v1618
        %v1676 = vmul.f32 %v1661, %v1620
        %v1677 = vmul.f32 %v1661, %v1622
        %v1678 = vmul.f32 %v1661, %v1624
        %v1679 = vmul.f32 %v1661, %v1626
        %v1680 = vmul.f32 %v1661, %v1628
        %v1681 = vmul.f32 %v1661, %v1630
        %v1682 = vmul.f32 %v1661, %v1632
        %v1683 = vmul.f32 %v1661, %v1634
        %v1684 = vmul.f32 %v1661, %v1636
        %v1685 = vmul.f32 %v1661, %v1638
        %v1686 = vmul.f32 %v1661, %v1640
        %v1687 = vmul.f32 %v1661, %v1642
        %v1688 = vmul.f32 %v1661, %v1644
        %v1689 = vmul.f32 %v1661, %v1646
        %v1690 = vmul.f32 %v1661, %v1648
        %v1691 = vmul.f32 %v1661, %v1650
        %v1692 = vmul.f32 %v1661, %v1652
        %v1693 = vmul.f32 %v1661, %v1654
        %v1694 = vmul.f32 %v1661, %v1656
        %v1695 = vld [vmem:[%s4] sm:$0x1]
        %v1697 = vlaneseq
        %v1698 = vshrl.u32 %v1697, 7
        %v1699 = vsub.s32 0, %v1698
        %v1700 = vrot.slane %v1695, %v1699
        %v1702 = vadd.f32 %v1663, %v1700
        %v1703 = vadd.f32 %v1664, %v1700
        %v1704 = vadd.f32 %v1665, %v1700
        %v1705 = vadd.f32 %v1666, %v1700
        %v1706 = vadd.f32 %v1667, %v1700
        %v1707 = vadd.f32 %v1668, %v1700
        %v1708 = vadd.f32 %v1669, %v1700
        %v1709 = vadd.f32 %v1670, %v1700
        %v1710 = vadd.f32 %v1671, %v1700
        %v1711 = vadd.f32 %v1672, %v1700
        %v1712 = vadd.f32 %v1673, %v1700
        %v1713 = vadd.f32 %v1674, %v1700
        %v1714 = vadd.f32 %v1675, %v1700
        %v1715 = vadd.f32 %v1676, %v1700
        %v1716 = vadd.f32 %v1677, %v1700
        %v1717 = vadd.f32 %v1678, %v1700
        %v1718 = vadd.f32 %v1679, %v1700
        %v1719 = vadd.f32 %v1680, %v1700
        %v1720 = vadd.f32 %v1681, %v1700
        %v1721 = vadd.f32 %v1682, %v1700
        %v1722 = vadd.f32 %v1683, %v1700
        %v1723 = vadd.f32 %v1684, %v1700
        %v1724 = vadd.f32 %v1685, %v1700
        %v1725 = vadd.f32 %v1686, %v1700
        %v1726 = vadd.f32 %v1687, %v1700
        %v1727 = vadd.f32 %v1688, %v1700
        %v1728 = vadd.f32 %v1689, %v1700
        %v1729 = vadd.f32 %v1690, %v1700
        %v1730 = vadd.f32 %v1691, %v1700
        %v1731 = vadd.f32 %v1692, %v1700
        %v1732 = vadd.f32 %v1693, %v1700
        %v1733 = vadd.f32 %v1694, %v1700
        %1734 = vst [vmem:[%s218] sm:$0xff] %v1702
        %1735 = vst [vmem:[%s218 + $0x8] sm:$0xff] %v1703
        %1736 = vst [vmem:[%s218 + $0x10] sm:$0xff] %v1704
        %1737 = vst [vmem:[%s218 + $0x18] sm:$0xff] %v1705
        %1738 = vst [vmem:[%s218 + $0x20] sm:$0xff] %v1706
        %1739 = vst [vmem:[%s218 + $0x28] sm:$0xff] %v1707
        %1740 = vst [vmem:[%s218 + $0x30] sm:$0xff] %v1708
        %1741 = vst [vmem:[%s218 + $0x38] sm:$0xff] %v1709
        %1742 = vst [vmem:[%s218 + $0x40] sm:$0xff] %v1710
        %1743 = vst [vmem:[%s218 + $0x48] sm:$0xff] %v1711
        %1744 = vst [vmem:[%s218 + $0x50] sm:$0xff] %v1712
        %1745 = vst [vmem:[%s218 + $0x58] sm:$0xff] %v1713
        %1746 = vst [vmem:[%s218 + $0x60] sm:$0xff] %v1714
        %1747 = vst [vmem:[%s218 + $0x68] sm:$0xff] %v1715
        %1748 = vst [vmem:[%s218 + $0x70] sm:$0xff] %v1716
        %1749 = vst [vmem:[%s218 + $0x78] sm:$0xff] %v1717
        %1750 = vst [vmem:[%s218 + $0x80] sm:$0xff] %v1718
        %1751 = vst [vmem:[%s218 + $0x88] sm:$0xff] %v1719
        %1752 = vst [vmem:[%s218 + $0x90] sm:$0xff] %v1720
        %1753 = vst [vmem:[%s218 + $0x98] sm:$0xff] %v1721
        %1754 = vst [vmem:[%s218 + $0xa0] sm:$0xff] %v1722
        %1755 = vst [vmem:[%s218 + $0xa8] sm:$0xff] %v1723
        %1756 = vst [vmem:[%s218 + $0xb0] sm:$0xff] %v1724
        %1757 = vst [vmem:[%s218 + $0xb8] sm:$0xff] %v1725
        %1758 = vst [vmem:[%s218 + $0xc0] sm:$0xff] %v1726
        %1759 = vst [vmem:[%s218 + $0xc8] sm:$0xff] %v1727
        %1760 = vst [vmem:[%s218 + $0xd0] sm:$0xff] %v1728
        %1761 = vst [vmem:[%s218 + $0xd8] sm:$0xff] %v1729
        %1762 = vst [vmem:[%s218 + $0xe0] sm:$0xff] %v1730
        %1763 = vst [vmem:[%s218 + $0xe8] sm:$0xff] %v1731
        %1764 = vst [vmem:[%s218 + $0xf0] sm:$0xff] %v1732
        %1765 = vst [vmem:[%s218 + $0xf8] sm:$0xff] %v1733
        %s1766 = sand.u32 %s137, 1
        %s1767 = scalar_lea.sflag [#allocation3], %s1766
        %s1768 = sand.u32 %s137, 1
        %s1769 = smul.addr %s1768, 256
        %s1770 = scalar_lea.vmem [#allocation2], %s1769
        // Predicated region
        $region41: #{tpu_custom_call.1} parent=39 // pred_check
          %p1771 = pneg %p147
        $region42: #{tpu_custom_call.1} parent=39 // pred_check_branch
          %1773 = sbr.rel (%p1771) target = $region44
        $region43: #{tpu_custom_call.1} parent=39 // pred_region
          %s1774 = smul.u32 32, %s19
          %s1776 = ssub.s32 4096, 4096
          %1777 = vsyncadd %s1767, %s1776
          %s1778 = smul.addr %s1774, 128
          %s1779 = scalar_lea.hbm %s5, %s1778
          %s1780 = sshll.u32 %s1770, 4
          %s1781 = int_to_ptr.vmem [resolvable:$true] %s1780
          %1786 = dma.vmem_to_hbm [thread:$0]  %s1781, 4096, %s1779, %s1767, 128, 128, 8
        $region44: #{tpu_custom_call.1} parent=39 // pred_fallthru
          _
      $region40: #{tpu_custom_call.1} parent=5 // pred_fallthru
        _
      %p1787 = scmp.le.s32.totalorder 2, %s14
      // Predicated region
      $region45: #{tpu_custom_call.1} parent=5 // pred_check
        %p1788 = pneg %p1787
      $region46: #{tpu_custom_call.1} parent=5 // pred_check_branch
        %1790 = sbr.rel (%p1788) target = $region48
      $region47: #{tpu_custom_call.1} parent=5 // pred_region
        %s1791 = ssub.s32 %s14, 2
        // Predicated region
        $region49: #{tpu_custom_call.1} parent=47 // pred_check
          %p1792 = pneg %p153
        $region50: #{tpu_custom_call.1} parent=47 // pred_check_branch
          %1794 = sbr.rel (%p1792) target = $region52
        $region51: #{tpu_custom_call.1} parent=47 // pred_region
          %s1795 = sand.u32 %s138, 1
          %s1796 = scalar_lea.sflag [#allocation3], %s1795
          %s1797 = sand.u32 %s138, 1
          %s1798 = smul.addr %s1797, 256
          %s1799 = scalar_lea.vmem [#allocation2], %s1798
          %1800 = dma.done %s1796, 4096
        $region52: #{tpu_custom_call.1} parent=47 // pred_fallthru
          _
      $region48: #{tpu_custom_call.1} parent=5 // pred_fallthru
        _
    $region6: #{tpu_custom_call.1} parent=1 // loop_footer
      %s18 = sadd.s32 1, %s14
    $region7: #{tpu_custom_call.1} parent=1 // loop_footer_branch
      %13 = sbr.rel target = $region3
    $region8: #{tpu_custom_call.1} parent=1 // loop_exit
      _
    %1801 = vsyncpa [#allocation3], 1
    %s1802 = scalar_lea.sflag [#allocation3], 1
    %1803 = vsyncpa %s1802, 1

</llo_original>
